<compile_context>
chip_gen: v7x
topology: tpu7x:2x2x1
jax: 0.10.0
libtpu: 0.0.40
codegen_flags: <defaults>
</compile_context>

<pallas_src>
import functools

import numpy as np
import jax
import jax.numpy as jnp
from jax import lax
from jax.experimental import pallas as pl
from jax.experimental.pallas import tpu as pltpu

LANE = 128       # lane-dense table / output width (param dims padded up to this)
MAX_TK = 2048    # table rows per K tile once the fused table gets large

_PARAM_SPECS = [
    ("bond_params", "bond_type"),
    ("angle_params", "angle_type"),
    ("dihedral_params", "dihedral_type"),
    ("dispersion_params", "atom_type"),
    ("improper_params", "improper_type"),
    ("electrostatic_params", "atom_type"),
    ("true_charge", "atom_type"),
]

_FUSED_TABLE_CACHE = {}


def _next_pow2(x):
    return 1 if x <= 1 else 1 << (x - 1).bit_length()


def _gather_kernel(idx_ref, table_ref, out_ref, acc_ref):
    # idx_ref  : VMEM (block_rows, 1)  int32  -- fused, offset-shifted indices
    # table_ref: VMEM (tk, 128)        float  -- one K tile of the fused table
    # out_ref  : VMEM (block_rows,128) float  -- gathered rows (lane-dense)
    # acc_ref  : VMEM (block_rows,128) f32    -- accumulator across K tiles
    k = pl.program_id(1)

    @pl.when(k == 0)
    def _():
        acc_ref[...] = jnp.zeros_like(acc_ref)

    rows = idx_ref.shape[0]
    tk = table_ref.shape[0]
    idx = idx_ref[...]                                            # (rows, 1)
    iota = k * tk + lax.broadcasted_iota(jnp.int32, (rows, tk), 1)
    onehot = (iota == idx).astype(table_ref.dtype)                # (rows, tk)
    acc_ref[...] += jnp.dot(
        onehot, table_ref[...],
        preferred_element_type=jnp.float32,
        precision=lax.Precision.HIGHEST,                          # exact gather
    )

    @pl.when(k == pl.num_programs(1) - 1)
    def _():
        out_ref[...] = acc_ref[...].astype(out_ref.dtype)


@functools.partial(jax.jit, static_argnames=("block_rows", "tk"))
def _fused_gather(table_padded, idx_padded, *, block_rows, tk):
    """table_padded: (T_pad, 128); idx_padded: (N_pad,) int32 -> (N_pad, 128)."""
    n_pad = idx_padded.shape[0]
    t_pad = table_padded.shape[0]
    r_steps = n_pad // block_rows
    k_steps = t_pad // tk
    # Single-buffer the table when it is fully resident (constant block index),
    # default double-buffering when it is streamed along K.
    table_bufs = 1 if k_steps == 1 else 2

    # Explicit scoped-VMEM budget with headroom (v5e default is only 16 MiB).
    need = (table_bufs * tk * LANE * 4        # fused table tile(s)
            + 2 * block_rows * LANE * 4       # idx tiles (lane-padded)
            + 2 * block_rows * LANE * 4       # output tiles
            + block_rows * LANE * 4)          # f32 accumulator scratch
    vmem_limit = int(min(48 * 1024 * 1024, max(2 * need, 16 * 1024 * 1024)))

    return pl.pallas_call(
        _gather_kernel,
        out_shape=jax.ShapeDtypeStruct((n_pad, LANE), table_padded.dtype),
        grid=(r_steps, k_steps),
        in_specs=[
            pl.BlockSpec((block_rows, 1), lambda i, k: (i, 0)),
            pl.BlockSpec((tk, LANE), lambda i, k: (k, 0),
                         pipeline_mode=pl.Buffered(table_bufs)),
        ],
        out_specs=pl.BlockSpec((block_rows, LANE), lambda i, k: (i, 0)),
        scratch_shapes=[pltpu.VMEM((block_rows, LANE), jnp.float32)],
        compiler_params=pltpu.CompilerParams(
            dimension_semantics=("parallel", "arbitrary"),
            vmem_limit_bytes=vmem_limit),
    )(idx_padded.reshape(n_pad, 1), table_padded)


def _build_fused_table(dataset):
    """Fuse all non-empty parameter tables into one lane-dense (T_pad, 128)
    device array.  Cached per dataset object (dataset is static weights).
    Returns (fused_table | None, row_offset, widths, orig_dtypes)."""
    # TODO(synk): cache keys on object identity; rebuild if the dataset dict
    # object is replaced (parameter updates in-place keep the same arrays only
    # if the caller refreshes this cache).
    cache_key = id(dataset)
    hit = _FUSED_TABLE_CACHE.get(cache_key)
    if hit is not None:
        return hit

    out_keys = [k for k, _ in _PARAM_SPECS]
    nonempty = [k for k in out_keys if dataset[k].size]
    if not nonempty:
        entry = (None, {}, {}, {})
        _FUSED_TABLE_CACHE[cache_key] = entry
        return entry

    fused_dtype = np.dtype(jnp.result_type(*[dataset[k].dtype for k in nonempty]))

    row_offset, widths, orig_dtypes = {}, {}, {}
    blocks = []
    offset = 0
    for k in out_keys:
        tbl = np.asarray(jax.device_get(dataset[k]))
        if tbl.size == 0:
            continue
        t, d = tbl.shape
        # TODO(synk): lane-chunk parameter tables wider than 128 columns.
        assert d <= LANE, f"{k}: parameter width {d} exceeds {LANE}"
        row_offset[k] = offset
        widths[k] = d
        orig_dtypes[k] = dataset[k].dtype
        blk = np.zeros((t, LANE), fused_dtype)
        blk[:, :d] = tbl.astype(fused_dtype)
        blocks.append(blk)
        offset += t

    t_total = offset
    if t_total <= MAX_TK:
        t_pad = max(8, ((t_total + 7) // 8) * 8)
    else:
        t_pad = ((t_total + MAX_TK - 1) // MAX_TK) * MAX_TK
    fused_np = np.zeros((t_pad, LANE), fused_dtype)
    fused_np[:t_total] = np.concatenate(blocks, axis=0)
    fused_table = jnp.asarray(fused_np)   # one host->device transfer, cached

    entry = (fused_table, row_offset, widths, orig_dtypes)
    _FUSED_TABLE_CACHE[cache_key] = entry
    return entry


def discrete_model_forward(batch, dataset):
    """Mirror of DiscreteModel.forward: assign per-molecule parameters by
    gathering rows from the shared dataset tables (one fused Pallas gather
    for the whole batch). Returns (per-molecule dicts, counter)."""
    out_keys = [k for k, _ in _PARAM_SPECS]
    results = [{k: None for k in out_keys} for _ in batch]
    counter = len(batch)

    fused_table, row_offset, widths, orig_dtypes = _build_fused_table(dataset)
    if fused_table is None:
        # Every table empty -> every parameter stays None.
        # TODO(synk): torch indexes dataset.true_charge unconditionally and
        # would raise here; we return None instead.
        return results, counter

    # Fuse per-molecule index vectors on the host (mirrors `.cpu()` in torch),
    # shifting each by its table's row offset in the fused table.
    segments = []          # (mol_idx, out_key, start, length)
    idx_parts = []
    cursor = 0
    for mi, molecule in enumerate(batch):
        for out_key, idx_key in _PARAM_SPECS:
            if out_key not in row_offset:        # empty table -> stays None
                continue
            idx = np.asarray(jax.device_get(molecule[idx_key]), np.int32)
            n = int(idx.shape[0])
            idx_parts.append(idx + row_offset[out_key])
            segments.append((mi, out_key, cursor, n))
            cursor += n
    n_total = cursor

    # Pow-2 bucketed row padding -> few recompiles across varying batches.
    n_blocks = max(1, -(-n_total // LANE))
    n_pad = LANE * _next_pow2(n_blocks)
    # 256-row MXU tiles on v6e/v7x; guarantees >=2 row steps once n_pad >= 256
    # so the "parallel" axis can shard across v7x's two TensorCores.
    block_rows = min(256, max(LANE, n_pad // 2))

    fused_idx = np.full((n_pad,), -1, np.int32)  # -1 -> all-zero one-hot row
    if n_total:
        fused_idx[:n_total] = np.concatenate(idx_parts)

    t_pad = fused_table.shape[0]
    tk = t_pad if t_pad <= MAX_TK else MAX_TK

    gathered = _fused_gather(fused_table, fused_idx,
                             block_rows=block_rows, tk=tk)   # (n_pad, 128)

    # Thin per-segment views; cast back to each table's original dtype so the
    # outputs match the torch module's per-table dtypes.
    for mi, out_key, start, length in segments:
        width = widths[out_key]
        seg = gathered[start:start + length, :width]
        if seg.dtype != orig_dtypes[out_key]:
            seg = seg.astype(orig_dtypes[out_key])
        results[mi][out_key] = seg
    return results, counter


if __name__ == "__main__":
    key = jax.random.PRNGKey(0)
    ks = jax.random.split(key, 12)

    n_bond_types, n_angle_types, n_dih_types, n_atom_types = 6, 5, 4, 4

    dataset = {
        "bond_params": jax.random.normal(ks[0], (n_bond_types, 2), jnp.float32),
        "angle_params": jax.random.normal(ks[1], (n_angle_types, 2), jnp.float32),
        "dihedral_params": jax.random.normal(ks[2], (n_dih_types, 4), jnp.float32),
        "dispersion_params": jax.random.normal(ks[3], (n_atom_types, 2), jnp.float32),
        # empty table -> exercises the `numel()==0 -> None` branch
        "improper_params": jnp.zeros((0, 2), jnp.float32),
        "electrostatic_params": jax.random.normal(ks[4], (n_atom_types, 1), jnp.float32),
        "true_charge": jax.random.normal(ks[5], (n_atom_types, 1), jnp.float32),
    }

    def rand_idx(k, n, hi):
        return jax.random.randint(k, (n,), 0, hi, jnp.int32)

    batch = [
        {  # molecule 1: 8 atoms, 7 bonds, 6 angles, 5 dihedrals, 2 impropers
            "atom_type": rand_idx(ks[6], 8, n_atom_types),
            "bond_type": rand_idx(ks[7], 7, n_bond_types),
            "angle_type": rand_idx(ks[8], 6, n_angle_types),
            "dihedral_type": rand_idx(ks[9], 5, n_dih_types),
            "improper_type": rand_idx(ks[10], 2, 1),
        },
        {  # molecule 2: 6 atoms, 5 bonds, 4 angles, 3 dihedrals, 1 improper
            "atom_type": rand_idx(ks[11], 6, n_atom_types),
            "bond_type": rand_idx(ks[7], 5, n_bond_types),
            "angle_type": rand_idx(ks[8], 4, n_angle_types),
            "dihedral_type": rand_idx(ks[9], 3, n_dih_types),
            "improper_type": rand_idx(ks[10], 1, 1),
        },
    ]

    results, counter = discrete_model_forward(batch, dataset)

    # verify against the pure-JAX reference gather
    for mol, mol_out in zip(batch, results):
        for out_key, idx_key in _PARAM_SPECS:
            got = mol_out[out_key]
            table = dataset[out_key]
            if table.size == 0:
                assert got is None
                continue
            got = jax.block_until_ready(got)
            ref = table[mol[idx_key]]
            assert got.shape == ref.shape, f"shape mismatch in {out_key}"
            assert got.dtype == ref.dtype, f"dtype mismatch in {out_key}"
            assert jnp.allclose(got, ref, rtol=1e-6, atol=1e-6), \
                f"value mismatch in {out_key}"

    assert counter == len(batch)
    print("KERNEL_OK")
</pallas_src>

<mosaic_0001>
module attributes {stable_mosaic.version = 11 : i64} {
  func.func @_gather_kernel(%arg0: i32, %arg1: i32, %arg2: memref<128x1xi32, #tpu.memory_space<vmem>>, %arg3: memref<32x128xf32, #tpu.memory_space<vmem>>, %arg4: memref<128x128xf32, #tpu.memory_space<vmem>>, %arg5: memref<128x128xf32, #tpu.memory_space<vmem>>) attributes {dimension_semantics = [#tpu.dimension_semantics<parallel>, #tpu.dimension_semantics<arbitrary>], iteration_bounds = array<i64: 1, 1>, scalar_prefetch = 0 : i64, scratch_operands = 1 : i64, tpu.core_type = #tpu.core_type<tc>, window_params = [{transform_indices = @transform_0, window_bounds = array<i64: 128, 1>}, {pipeline_mode = #tpu.pipeline_mode<synchronous>, transform_indices = @transform_1, window_bounds = array<i64: 32, 128>}, {transform_indices = @transform_2, window_bounds = array<i64: 128, 128>}]} {
    %c0_i32 = arith.constant 0 : i32
    %0 = arith.cmpi eq, %arg1, %c0_i32 : i32
    %1 = arith.extui %0 : i1 to i32
    %c0_i32_0 = arith.constant 0 : i32
    %2 = arith.cmpi ne, %1, %c0_i32_0 : i32
    scf.if %2 {
      %cst_10 = arith.constant 0.000000e+00 : f32
      %20 = vector.broadcast %cst_10 : f32 to vector<128x128xf32>
      %c0_11 = arith.constant 0 : index
      %c0_12 = arith.constant 0 : index
      %21 = vector.load %arg5[%c0_11, %c0_12] : memref<128x128xf32, #tpu.memory_space<vmem>>, vector<128x128xf32>
      tpu.vector_store %arg5[%c0_11, %c0_12], %20 {strides = array<i32>} : memref<128x128xf32, #tpu.memory_space<vmem>>, vector<128x128xf32>,
    } else {
    }
    %c0 = arith.constant 0 : index
    %c0_1 = arith.constant 0 : index
    %3 = vector.load %arg2[%c0, %c0_1] : memref<128x1xi32, #tpu.memory_space<vmem>>, vector<128x1xi32>
    %c32_i32 = arith.constant 32 : i32
    %4 = arith.muli %arg1, %c32_i32 : i32
    %5 = tpu.iota {dimensions = array<i32: 1>} : vector<128x32xi32>
    %6 = vector.broadcast %4 : i32 to vector<128x32xi32>
    %7 = arith.addi %6, %5 : vector<128x32xi32>
    %8 = vector.broadcast %3 : vector<128x1xi32> to vector<128x32xi32>
    %9 = arith.cmpi eq, %7, %8 : vector<128x32xi32>
    %10 = arith.extui %9 : vector<128x32xi1> to vector<128x32xi32>
    %11 = arith.sitofp %10 : vector<128x32xi32> to vector<128x32xf32>
    %c0_2 = arith.constant 0 : index
    %c0_3 = arith.constant 0 : index
    %12 = vector.load %arg5[%c0_2, %c0_3] : memref<128x128xf32, #tpu.memory_space<vmem>>, vector<128x128xf32>
    %c0_4 = arith.constant 0 : index
    %c0_5 = arith.constant 0 : index
    %13 = vector.load %arg3[%c0_4, %c0_5] : memref<32x128xf32, #tpu.memory_space<vmem>>, vector<32x128xf32>
    %cst = arith.constant dense<0.000000e+00> : vector<128x128xf32>
    %14 = tpu.matmul %11, %13, %cst {dimension_numbers = #tpu.dot_dimension_numbers<[1], [0], [0], [1], [0, 0, 1, 1], [], []>, precision = #tpu.contract_precision<fp32>} : vector<128x32xf32>, vector<32x128xf32>, vector<128x128xf32> -> vector<128x128xf32>
    %15 = arith.addf %12, %14 : vector<128x128xf32>
    %c0_6 = arith.constant 0 : index
    %c0_7 = arith.constant 0 : index
    %16 = vector.load %arg5[%c0_6, %c0_7] : memref<128x128xf32, #tpu.memory_space<vmem>>, vector<128x128xf32>
    tpu.vector_store %arg5[%c0_6, %c0_7], %15 {strides = array<i32>} : memref<128x128xf32, #tpu.memory_space<vmem>>, vector<128x128xf32>,
    %c0_i32_8 = arith.constant 0 : i32
    %17 = arith.cmpi eq, %arg1, %c0_i32_8 : i32
    %18 = arith.extui %17 : i1 to i32
    %c0_i32_9 = arith.constant 0 : i32
    %19 = arith.cmpi ne, %18, %c0_i32_9 : i32
    scf.if %19 {
      %c0_10 = arith.constant 0 : index
      %c0_11 = arith.constant 0 : index
      %20 = vector.load %arg5[%c0_10, %c0_11] : memref<128x128xf32, #tpu.memory_space<vmem>>, vector<128x128xf32>
      %c0_12 = arith.constant 0 : index
      %c0_13 = arith.constant 0 : index
      %21 = vector.load %arg4[%c0_12, %c0_13] : memref<128x128xf32, #tpu.memory_space<vmem>>, vector<128x128xf32>
      tpu.vector_store %arg4[%c0_12, %c0_13], %20 {strides = array<i32>} : memref<128x128xf32, #tpu.memory_space<vmem>>, vector<128x128xf32>,
    } else {
    }
    return
  }
  func.func @transform_0(%arg0: i32, %arg1: i32) -> (i32, i32) {
    %c0_i32 = arith.constant 0 : i32
    %c0_i32_0 = arith.constant 0 : i32
    return %arg0, %c0_i32 : i32, i32
  }
  func.func @transform_1(%arg0: i32, %arg1: i32) -> (i32, i32) {
    %c0_i32 = arith.constant 0 : i32
    %c0_i32_0 = arith.constant 0 : i32
    return %arg1, %c0_i32 : i32, i32
  }
  func.func @transform_2(%arg0: i32, %arg1: i32) -> (i32, i32) {
    %c0_i32 = arith.constant 0 : i32
    %c0_i32_0 = arith.constant 0 : i32
    return %arg0, %c0_i32 : i32, i32
  }
}

</mosaic_0001>

<llo_original>
// kernel: _fused_gather.1
$region0: #{_fused_gather.1}
  #allocation0 [shape = 'u32[]', space=smem, size = 0x4, offset = 0x4, fixed_abs, tag = 'smem constant byte address 0x4 - core index']
  #allocation1 [shape = 'u32[144,128]{1,0:T(1,128)}', space=vmem, size = 0x12000, scoped, tag = 'internal scratch']
  #allocation2 [shape = 'f32[128,128]{1,0:T(8,128)}', space=vmem, size = 0x10000, scoped, tag = 'scratch operand']
  %s0 = inlined_call_operand.vmem [shape: s32[128,1], index: 0, kind: input, shape index: {}]
  %s1 = inlined_call_operand.vmem [shape: f32[32,128], index: 1, kind: input, shape index: {}]
  %s2 = inlined_call_operand.hbm [shape: f32[128,128], index: 2, kind: output, shape index: {}]
  %s3 = sld [smem:[#allocation0]]
  $region26: #{_fused_gather.1} parent=0
    _
  %s5 = ssub.s32 1, %s3
  %s6 = scalar_select 0, %s5, %s3
  $region1: #{_fused_gather.1} parent=0
    #allocation3 [shape = 'u8[65536]{0}', space=vmem, size = 0x10000, scoped, tag = 'output window, operand 0, single buffered']
    #allocation4 [shape = 's32[1]{0}', space=sflag, size = 0x4, scoped, tag = 'scoped memory for _fused_gather.1']
    %7 = vsyncpa [#allocation4], 0
    // Predicated region
    $region2: #{_fused_gather.1} parent=1 // pred_check
      _
    $region3: #{_fused_gather.1} parent=1 // pred_check_branch
      %9 = sbr.rel (0) target = $region5
    $region4: #{_fused_gather.1} parent=1 // pred_region
      _
    $region5: #{_fused_gather.1} parent=1 // pred_fallthru
      _
    // Predicated region
    $region6: #{_fused_gather.1} parent=1 // pred_check
      _
    $region7: #{_fused_gather.1} parent=1 // pred_check_branch
      %11 = sbr.rel (0) target = $region9
    $region8: #{_fused_gather.1} parent=1 // pred_region
      _
    $region9: #{_fused_gather.1} parent=1 // pred_fallthru
      _
    %p12 = scmp.eq.s32.totalorder 0, 0
    // Predicated region
    $region10: #{_fused_gather.1} parent=1 // pred_check
      %p13 = pneg %p12
    $region11: #{_fused_gather.1} parent=1 // pred_check_branch
      %15 = sbr.rel (%p13) target = $region13
    $region12: #{_fused_gather.1} parent=1 // pred_region
      %16 = vst [vmem:[#allocation2] sm:$0xff] 0.0
      %17 = vst [vmem:[#allocation2 + $0x8] sm:$0xff] 0.0
      %18 = vst [vmem:[#allocation2 + $0x10] sm:$0xff] 0.0
      %19 = vst [vmem:[#allocation2 + $0x18] sm:$0xff] 0.0
      %20 = vst [vmem:[#allocation2 + $0x20] sm:$0xff] 0.0
      %21 = vst [vmem:[#allocation2 + $0x28] sm:$0xff] 0.0
      %22 = vst [vmem:[#allocation2 + $0x30] sm:$0xff] 0.0
      %23 = vst [vmem:[#allocation2 + $0x38] sm:$0xff] 0.0
      %24 = vst [vmem:[#allocation2 + $0x40] sm:$0xff] 0.0
      %25 = vst [vmem:[#allocation2 + $0x48] sm:$0xff] 0.0
      %26 = vst [vmem:[#allocation2 + $0x50] sm:$0xff] 0.0
      %27 = vst [vmem:[#allocation2 + $0x58] sm:$0xff] 0.0
      %28 = vst [vmem:[#allocation2 + $0x60] sm:$0xff] 0.0
      %29 = vst [vmem:[#allocation2 + $0x68] sm:$0xff] 0.0
      %30 = vst [vmem:[#allocation2 + $0x70] sm:$0xff] 0.0
      %31 = vst [vmem:[#allocation2 + $0x78] sm:$0xff] 0.0
    $region13: #{_fused_gather.1} parent=1 // pred_fallthru
      _
    %v32 = vld [vmem:[%s0] sm:$0xff]
    %v33 = vld [vmem:[%s0 + $0x8] sm:$0xff]
    %v34 = vld [vmem:[%s0 + $0x10] sm:$0xff]
    %v35 = vld [vmem:[%s0 + $0x18] sm:$0xff]
    %v36 = vld [vmem:[%s0 + $0x20] sm:$0xff]
    %v37 = vld [vmem:[%s0 + $0x28] sm:$0xff]
    %v38 = vld [vmem:[%s0 + $0x30] sm:$0xff]
    %v39 = vld [vmem:[%s0 + $0x38] sm:$0xff]
    %v40 = vld [vmem:[%s0 + $0x40] sm:$0xff]
    %v41 = vld [vmem:[%s0 + $0x48] sm:$0xff]
    %v42 = vld [vmem:[%s0 + $0x50] sm:$0xff]
    %v43 = vld [vmem:[%s0 + $0x58] sm:$0xff]
    %v44 = vld [vmem:[%s0 + $0x60] sm:$0xff]
    %v45 = vld [vmem:[%s0 + $0x68] sm:$0xff]
    %v46 = vld [vmem:[%s0 + $0x70] sm:$0xff]
    %v47 = vld [vmem:[%s0 + $0x78] sm:$0xff]
    %s48 = smul.u32 0, 32
    %v49 = vlaneseq
    %v50 = vand.u32 %v49, 127
    %v51 = vstv %s48
    %v52 = vadd.s32 %v51, %v50
    %53 = vset.pattern.permute.xlu0 0
    %54 = vperm.xlu0 %53, %v32
    %v55 = vpop.permute.xlu0 %54
    %56 = vset.pattern.permute.xlu0 0
    %57 = vperm.xlu0 %56, %v33
    %v58 = vpop.permute.xlu0 %57
    %59 = vset.pattern.permute.xlu0 0
    %60 = vperm.xlu0 %59, %v34
    %v61 = vpop.permute.xlu0 %60
    %62 = vset.pattern.permute.xlu0 0
    %63 = vperm.xlu0 %62, %v35
    %v64 = vpop.permute.xlu0 %63
    %65 = vset.pattern.permute.xlu0 0
    %66 = vperm.xlu0 %65, %v36
    %v67 = vpop.permute.xlu0 %66
    %68 = vset.pattern.permute.xlu0 0
    %69 = vperm.xlu0 %68, %v37
    %v70 = vpop.permute.xlu0 %69
    %71 = vset.pattern.permute.xlu0 0
    %72 = vperm.xlu0 %71, %v38
    %v73 = vpop.permute.xlu0 %72
    %74 = vset.pattern.permute.xlu0 0
    %75 = vperm.xlu0 %74, %v39
    %v76 = vpop.permute.xlu0 %75
    %77 = vset.pattern.permute.xlu0 0
    %78 = vperm.xlu0 %77, %v40
    %v79 = vpop.permute.xlu0 %78
    %80 = vset.pattern.permute.xlu0 0
    %81 = vperm.xlu0 %80, %v41
    %v82 = vpop.permute.xlu0 %81
    %83 = vset.pattern.permute.xlu0 0
    %84 = vperm.xlu0 %83, %v42
    %v85 = vpop.permute.xlu0 %84
    %86 = vset.pattern.permute.xlu0 0
    %87 = vperm.xlu0 %86, %v43
    %v88 = vpop.permute.xlu0 %87
    %89 = vset.pattern.permute.xlu0 0
    %90 = vperm.xlu0 %89, %v44
    %v91 = vpop.permute.xlu0 %90
    %92 = vset.pattern.permute.xlu0 0
    %93 = vperm.xlu0 %92, %v45
    %v94 = vpop.permute.xlu0 %93
    %95 = vset.pattern.permute.xlu0 0
    %96 = vperm.xlu0 %95, %v46
    %v97 = vpop.permute.xlu0 %96
    %98 = vset.pattern.permute.xlu0 0
    %99 = vperm.xlu0 %98, %v47
    %v100 = vpop.permute.xlu0 %99
    %vm101 = vcmp.eq.s32.totalorder %v52, %v55
    %vm102 = vcmp.eq.s32.totalorder %v52, %v58
    %vm103 = vcmp.eq.s32.totalorder %v52, %v61
    %vm104 = vcmp.eq.s32.totalorder %v52, %v64
    %vm105 = vcmp.eq.s32.totalorder %v52, %v67
    %vm106 = vcmp.eq.s32.totalorder %v52, %v70
    %vm107 = vcmp.eq.s32.totalorder %v52, %v73
    %vm108 = vcmp.eq.s32.totalorder %v52, %v76
    %vm109 = vcmp.eq.s32.totalorder %v52, %v79
    %vm110 = vcmp.eq.s32.totalorder %v52, %v82
    %vm111 = vcmp.eq.s32.totalorder %v52, %v85
    %vm112 = vcmp.eq.s32.totalorder %v52, %v88
    %vm113 = vcmp.eq.s32.totalorder %v52, %v91
    %vm114 = vcmp.eq.s32.totalorder %v52, %v94
    %vm115 = vcmp.eq.s32.totalorder %v52, %v97
    %vm116 = vcmp.eq.s32.totalorder %v52, %v100
    %v117 = vsel %vm101, 1, 0
    %v118 = vsel %vm102, 1, 0
    %v119 = vsel %vm103, 1, 0
    %v120 = vsel %vm104, 1, 0
    %v121 = vsel %vm105, 1, 0
    %v122 = vsel %vm106, 1, 0
    %v123 = vsel %vm107, 1, 0
    %v124 = vsel %vm108, 1, 0
    %v125 = vsel %vm109, 1, 0
    %v126 = vsel %vm110, 1, 0
    %v127 = vsel %vm111, 1, 0
    %v128 = vsel %vm112, 1, 0
    %v129 = vsel %vm113, 1, 0
    %v130 = vsel %vm114, 1, 0
    %v131 = vsel %vm115, 1, 0
    %v132 = vsel %vm116, 1, 0
    %v133 = vcvt.s32.f32 %v117
    %v134 = vcvt.s32.f32 %v118
    %v135 = vcvt.s32.f32 %v119
    %v136 = vcvt.s32.f32 %v120
    %v137 = vcvt.s32.f32 %v121
    %v138 = vcvt.s32.f32 %v122
    %v139 = vcvt.s32.f32 %v123
    %v140 = vcvt.s32.f32 %v124
    %v141 = vcvt.s32.f32 %v125
    %v142 = vcvt.s32.f32 %v126
    %v143 = vcvt.s32.f32 %v127
    %v144 = vcvt.s32.f32 %v128
    %v145 = vcvt.s32.f32 %v129
    %v146 = vcvt.s32.f32 %v130
    %v147 = vcvt.s32.f32 %v131
    %v148 = vcvt.s32.f32 %v132
    %v149 = vld [vmem:[#allocation2] sm:$0xff]
    %v150 = vld [vmem:[#allocation2 + $0x8] sm:$0xff]
    %v151 = vld [vmem:[#allocation2 + $0x10] sm:$0xff]
    %v152 = vld [vmem:[#allocation2 + $0x18] sm:$0xff]
    %v153 = vld [vmem:[#allocation2 + $0x20] sm:$0xff]
    %v154 = vld [vmem:[#allocation2 + $0x28] sm:$0xff]
    %v155 = vld [vmem:[#allocation2 + $0x30] sm:$0xff]
    %v156 = vld [vmem:[#allocation2 + $0x38] sm:$0xff]
    %v157 = vld [vmem:[#allocation2 + $0x40] sm:$0xff]
    %v158 = vld [vmem:[#allocation2 + $0x48] sm:$0xff]
    %v159 = vld [vmem:[#allocation2 + $0x50] sm:$0xff]
    %v160 = vld [vmem:[#allocation2 + $0x58] sm:$0xff]
    %v161 = vld [vmem:[#allocation2 + $0x60] sm:$0xff]
    %v162 = vld [vmem:[#allocation2 + $0x68] sm:$0xff]
    %v163 = vld [vmem:[#allocation2 + $0x70] sm:$0xff]
    %v164 = vld [vmem:[#allocation2 + $0x78] sm:$0xff]
    %v165 = vld [vmem:[%s1] sm:$0xff]
    %v166 = vld [vmem:[%s1 + $0x8] sm:$0xff]
    %v167 = vld [vmem:[%s1 + $0x10] sm:$0xff]
    %v168 = vld [vmem:[%s1 + $0x18] sm:$0xff]
    %vm169 = vcmask 261120
    %v171 = vsel %vm169, %v133, 0
    %v174 = vsel %vm169, %v134, 0
    %v177 = vsel %vm169, %v135, 0
    %v180 = vsel %vm169, %v136, 0
    %v183 = vsel %vm169, %v137, 0
    %v186 = vsel %vm169, %v138, 0
    %v189 = vsel %vm169, %v139, 0
    %v192 = vsel %vm169, %v140, 0
    %v195 = vsel %vm169, %v141, 0
    %v198 = vsel %vm169, %v142, 0
    %v201 = vsel %vm169, %v143, 0
    %v204 = vsel %vm169, %v144, 0
    %v207 = vsel %vm169, %v145, 0
    %v210 = vsel %vm169, %v146, 0
    %v213 = vsel %vm169, %v147, 0
    %v216 = vsel %vm169, %v148, 0
    %218 = vmatprep.subr.mxu0 0.0
    %v219 = vand.u32 %v165, 4294901760
    %220 = vmatpush1.msra.mxu0 %v219
    %221 = vmatprep.subr.mxu0 0.0
    %v222 = vand.u32 %v166, 4294901760
    %223 = vmatpush1.msra.mxu0 %v222
    %224 = vmatprep.subr.mxu0 0.0
    %v225 = vand.u32 %v167, 4294901760
    %226 = vmatpush1.msra.mxu0 %v225
    %227 = vmatprep.subr.mxu0 0.0
    %v228 = vand.u32 %v168, 4294901760
    %229 = vmatpush1.msra.mxu0 %v228
    %230 = vmatprep.subr.mxu0 0.0
    %231 = vmatpush1.msra.mxu0 0.0
    %232 = vmatprep.subr.mxu0 0.0
    %233 = vmatpush1.msra.mxu0 0.0
    %234 = vmatprep.subr.mxu0 0.0
    %235 = vmatpush1.msra.mxu0 0.0
    %236 = vmatprep.subr.mxu0 0.0
    %237 = vmatpush1.msra.mxu0 0.0
    %238 = vmatprep.subr.mxu0 0.0
    %239 = vmatpush1.msra.mxu0 0.0
    %240 = vmatprep.subr.mxu0 0.0
    %241 = vmatpush1.msra.mxu0 0.0
    %242 = vmatprep.subr.mxu0 0.0
    %243 = vmatpush1.msra.mxu0 0.0
    %244 = vmatprep.subr.mxu0 0.0
    %245 = vmatpush1.msra.mxu0 0.0
    %246 = vmatprep.subr.mxu0 0.0
    %247 = vmatpush1.msra.mxu0 0.0
    %248 = vmatprep.subr.mxu0 0.0
    %249 = vmatpush1.msra.mxu0 0.0
    %250 = vmatprep.subr.mxu0 0.0
    %251 = vmatpush1.msra.mxu0 0.0
    %252 = vmatprep.subr.mxu0 0.0
    %253 = vmatpush1.msra.mxu0 0.0
    %254 = vmatprep.subr.mxu0 0.0
    %255 = vmatpush1.msra.mxu0 0.0
    %256 = vmatprep.subr.mxu0 0.0
    %257 = vmatpush1.msra.mxu0 0.0
    %258 = vmatprep.subr.mxu0 0.0
    %259 = vmatpush1.msra.mxu0 0.0
    %260 = vmatprep.subr.mxu0 0.0
    %261 = vmatpush1.msra.mxu0 0.0
    %262 = vmatprep.subr.mxu0 0.0
    %263 = vmatpush1.msra.mxu0 0.0
    %264 = vmatprep.subr.mxu0 0.0
    %265 = vmatpush1.msra.mxu0 0.0
    %266 = vmatprep.subr.mxu0 0.0
    %267 = vmatpush1.msra.mxu0 0.0
    %268 = vmatprep.subr.mxu0 0.0
    %269 = vmatpush1.msra.mxu0 0.0
    %270 = vmatprep.subr.mxu0 0.0
    %271 = vmatpush1.msra.mxu0 0.0
    %272 = vmatprep.subr.mxu0 0.0
    %273 = vmatpush1.msra.mxu0 0.0
    %274 = vmatprep.subr.mxu0 0.0
    %275 = vmatpush1.msra.mxu0 0.0
    %276 = vmatprep.subr.mxu0 0.0
    %277 = vmatpush1.msra.mxu0 0.0
    %278 = vmatprep.subr.mxu0 0.0
    %279 = vmatpush1.msra.mxu0 0.0
    %280 = vmatprep.subr.mxu0 0.0
    %281 = vmatpush1.msra.mxu0 0.0
    %282 = vmatprep.subr.mxu0 0.0
    %283 = vmatpush1.msra.mxu0 0.0
    %284 = vmatprep.subr.mxu0 0.0
    %285 = vmatpush1.msra.mxu0 0.0
    %286 = vmatprep.mubr.f32.mxu0 0.0
    %v287 = vand.u32 %v171, 4294901760
    %v288 = vsub.f32 %v171, %v287
    %v289 = vand.u32 %v288, 4294901760
    %v290 = vsub.f32 %v288, %v289
    %v291 = vand.u32 %v290, 4294901760
    %292 = vmatmul.mubr.f32.gmra.mrb[0].mxu0 %v291
    %v293 = vpop.f32.mrb[0].mxu0
    %v294 = vadd.f32 0.0, %v293
    %v295 = vpop.f32.mrb[0].mxu0
    %296 = vmatprep.mubr.f32.mxu0 0.0
    %v297 = vand.u32 %v174, 4294901760
    %v298 = vsub.f32 %v174, %v297
    %v299 = vand.u32 %v298, 4294901760
    %v300 = vsub.f32 %v298, %v299
    %v301 = vand.u32 %v300, 4294901760
    %302 = vmatmul.mubr.f32.gmra.mrb[0].mxu0 %v301
    %v303 = vpop.f32.mrb[0].mxu0
    %v304 = vadd.f32 0.0, %v303
    %v305 = vpop.f32.mrb[0].mxu0
    %306 = vmatprep.mubr.f32.mxu0 0.0
    %v307 = vand.u32 %v177, 4294901760
    %v308 = vsub.f32 %v177, %v307
    %v309 = vand.u32 %v308, 4294901760
    %v310 = vsub.f32 %v308, %v309
    %v311 = vand.u32 %v310, 4294901760
    %312 = vmatmul.mubr.f32.gmra.mrb[0].mxu0 %v311
    %v313 = vpop.f32.mrb[0].mxu0
    %v314 = vadd.f32 0.0, %v313
    %v315 = vpop.f32.mrb[0].mxu0
    %316 = vmatprep.mubr.f32.mxu0 0.0
    %v317 = vand.u32 %v180, 4294901760
    %v318 = vsub.f32 %v180, %v317
    %v319 = vand.u32 %v318, 4294901760
    %v320 = vsub.f32 %v318, %v319
    %v321 = vand.u32 %v320, 4294901760
    %322 = vmatmul.mubr.f32.gmra.mrb[0].mxu0 %v321
    %v323 = vpop.f32.mrb[0].mxu0
    %v324 = vadd.f32 0.0, %v323
    %v325 = vpop.f32.mrb[0].mxu0
    %326 = vmatprep.mubr.f32.mxu0 0.0
    %v327 = vand.u32 %v183, 4294901760
    %v328 = vsub.f32 %v183, %v327
    %v329 = vand.u32 %v328, 4294901760
    %v330 = vsub.f32 %v328, %v329
    %v331 = vand.u32 %v330, 4294901760
    %332 = vmatmul.mubr.f32.gmra.mrb[0].mxu0 %v331
    %v333 = vpop.f32.mrb[0].mxu0
    %v334 = vadd.f32 0.0, %v333
    %v335 = vpop.f32.mrb[0].mxu0
    %336 = vmatprep.mubr.f32.mxu0 0.0
    %v337 = vand.u32 %v186, 4294901760
    %v338 = vsub.f32 %v186, %v337
    %v339 = vand.u32 %v338, 4294901760
    %v340 = vsub.f32 %v338, %v339
    %v341 = vand.u32 %v340, 4294901760
    %342 = vmatmul.mubr.f32.gmra.mrb[0].mxu0 %v341
    %v343 = vpop.f32.mrb[0].mxu0
    %v344 = vadd.f32 0.0, %v343
    %v345 = vpop.f32.mrb[0].mxu0
    %346 = vmatprep.mubr.f32.mxu0 0.0
    %v347 = vand.u32 %v189, 4294901760
    %v348 = vsub.f32 %v189, %v347
    %v349 = vand.u32 %v348, 4294901760
    %v350 = vsub.f32 %v348, %v349
    %v351 = vand.u32 %v350, 4294901760
    %352 = vmatmul.mubr.f32.gmra.mrb[0].mxu0 %v351
    %v353 = vpop.f32.mrb[0].mxu0
    %v354 = vadd.f32 0.0, %v353
    %v355 = vpop.f32.mrb[0].mxu0
    %356 = vmatprep.mubr.f32.mxu0 0.0
    %v357 = vand.u32 %v192, 4294901760
    %v358 = vsub.f32 %v192, %v357
    %v359 = vand.u32 %v358, 4294901760
    %v360 = vsub.f32 %v358, %v359
    %v361 = vand.u32 %v360, 4294901760
    %362 = vmatmul.mubr.f32.gmra.mrb[0].mxu0 %v361
    %v363 = vpop.f32.mrb[0].mxu0
    %v364 = vadd.f32 0.0, %v363
    %v365 = vpop.f32.mrb[0].mxu0
    %366 = vmatprep.mubr.f32.mxu0 0.0
    %v367 = vand.u32 %v195, 4294901760
    %v368 = vsub.f32 %v195, %v367
    %v369 = vand.u32 %v368, 4294901760
    %v370 = vsub.f32 %v368, %v369
    %v371 = vand.u32 %v370, 4294901760
    %372 = vmatmul.mubr.f32.gmra.mrb[0].mxu0 %v371
    %v373 = vpop.f32.mrb[0].mxu0
    %v374 = vadd.f32 0.0, %v373
    %v375 = vpop.f32.mrb[0].mxu0
    %376 = vmatprep.mubr.f32.mxu0 0.0
    %v377 = vand.u32 %v198, 4294901760
    %v378 = vsub.f32 %v198, %v377
    %v379 = vand.u32 %v378, 4294901760
    %v380 = vsub.f32 %v378, %v379
    %v381 = vand.u32 %v380, 4294901760
    %382 = vmatmul.mubr.f32.gmra.mrb[0].mxu0 %v381
    %v383 = vpop.f32.mrb[0].mxu0
    %v384 = vadd.f32 0.0, %v383
    %v385 = vpop.f32.mrb[0].mxu0
    %386 = vmatprep.mubr.f32.mxu0 0.0
    %v387 = vand.u32 %v201, 4294901760
    %v388 = vsub.f32 %v201, %v387
    %v389 = vand.u32 %v388, 4294901760
    %v390 = vsub.f32 %v388, %v389
    %v391 = vand.u32 %v390, 4294901760
    %392 = vmatmul.mubr.f32.gmra.mrb[0].mxu0 %v391
    %v393 = vpop.f32.mrb[0].mxu0
    %v394 = vadd.f32 0.0, %v393
    %v395 = vpop.f32.mrb[0].mxu0
    %396 = vmatprep.mubr.f32.mxu0 0.0
    %v397 = vand.u32 %v204, 4294901760
    %v398 = vsub.f32 %v204, %v397
    %v399 = vand.u32 %v398, 4294901760
    %v400 = vsub.f32 %v398, %v399
    %v401 = vand.u32 %v400, 4294901760
    %402 = vmatmul.mubr.f32.gmra.mrb[0].mxu0 %v401
    %v403 = vpop.f32.mrb[0].mxu0
    %v404 = vadd.f32 0.0, %v403
    %v405 = vpop.f32.mrb[0].mxu0
    %406 = vmatprep.mubr.f32.mxu0 0.0
    %v407 = vand.u32 %v207, 4294901760
    %v408 = vsub.f32 %v207, %v407
    %v409 = vand.u32 %v408, 4294901760
    %v410 = vsub.f32 %v408, %v409
    %v411 = vand.u32 %v410, 4294901760
    %412 = vmatmul.mubr.f32.gmra.mrb[0].mxu0 %v411
    %v413 = vpop.f32.mrb[0].mxu0
    %v414 = vadd.f32 0.0, %v413
    %v415 = vpop.f32.mrb[0].mxu0
    %416 = vmatprep.mubr.f32.mxu0 0.0
    %v417 = vand.u32 %v210, 4294901760
    %v418 = vsub.f32 %v210, %v417
    %v419 = vand.u32 %v418, 4294901760
    %v420 = vsub.f32 %v418, %v419
    %v421 = vand.u32 %v420, 4294901760
    %422 = vmatmul.mubr.f32.gmra.mrb[0].mxu0 %v421
    %v423 = vpop.f32.mrb[0].mxu0
    %v424 = vadd.f32 0.0, %v423
    %v425 = vpop.f32.mrb[0].mxu0
    %426 = vmatprep.mubr.f32.mxu0 0.0
    %v427 = vand.u32 %v213, 4294901760
    %v428 = vsub.f32 %v213, %v427
    %v429 = vand.u32 %v428, 4294901760
    %v430 = vsub.f32 %v428, %v429
    %v431 = vand.u32 %v430, 4294901760
    %432 = vmatmul.mubr.f32.gmra.mrb[0].mxu0 %v431
    %v433 = vpop.f32.mrb[0].mxu0
    %v434 = vadd.f32 0.0, %v433
    %v435 = vpop.f32.mrb[0].mxu0
    %436 = vmatprep.mubr.f32.mxu0 0.0
    %v437 = vand.u32 %v216, 4294901760
    %v438 = vsub.f32 %v216, %v437
    %v439 = vand.u32 %v438, 4294901760
    %v440 = vsub.f32 %v438, %v439
    %v441 = vand.u32 %v440, 4294901760
    %442 = vmatmul.mubr.f32.gmra.mrb[0].mxu0 %v441
    %v443 = vpop.f32.mrb[0].mxu0
    %v444 = vadd.f32 0.0, %v443
    %v445 = vpop.f32.mrb[0].mxu0
    %446 = vdwg.mxu0
    %447 = vmatprep.subr.mxu0 0.0
    %v448 = vand.u32 %v165, 4294901760
    %v449 = vsub.f32 %v165, %v448
    %v450 = vand.u32 %v449, 4294901760
    %v451 = vsub.f32 %v449, %v450
    %v452 = vand.u32 %v451, 4294901760
    %453 = vmatpush1.msra.mxu0 %v452
    %454 = vmatprep.subr.mxu0 0.0
    %v455 = vand.u32 %v166, 4294901760
    %v456 = vsub.f32 %v166, %v455
    %v457 = vand.u32 %v456, 4294901760
    %v458 = vsub.f32 %v456, %v457
    %v459 = vand.u32 %v458, 4294901760
    %460 = vmatpush1.msra.mxu0 %v459
    %461 = vmatprep.subr.mxu0 0.0
    %v462 = vand.u32 %v167, 4294901760
    %v463 = vsub.f32 %v167, %v462
    %v464 = vand.u32 %v463, 4294901760
    %v465 = vsub.f32 %v463, %v464
    %v466 = vand.u32 %v465, 4294901760
    %467 = vmatpush1.msra.mxu0 %v466
    %468 = vmatprep.subr.mxu0 0.0
    %v469 = vand.u32 %v168, 4294901760
    %v470 = vsub.f32 %v168, %v469
    %v471 = vand.u32 %v470, 4294901760
    %v472 = vsub.f32 %v470, %v471
    %v473 = vand.u32 %v472, 4294901760
    %474 = vmatpush1.msra.mxu0 %v473
    %475 = vmatprep.subr.mxu0 0.0
    %476 = vmatpush1.msra.mxu0 0.0
    %477 = vmatprep.subr.mxu0 0.0
    %478 = vmatpush1.msra.mxu0 0.0
    %479 = vmatprep.subr.mxu0 0.0
    %480 = vmatpush1.msra.mxu0 0.0
    %481 = vmatprep.subr.mxu0 0.0
    %482 = vmatpush1.msra.mxu0 0.0
    %483 = vmatprep.subr.mxu0 0.0
    %484 = vmatpush1.msra.mxu0 0.0
    %485 = vmatprep.subr.mxu0 0.0
    %486 = vmatpush1.msra.mxu0 0.0
    %487 = vmatprep.subr.mxu0 0.0
    %488 = vmatpush1.msra.mxu0 0.0
    %489 = vmatprep.subr.mxu0 0.0
    %490 = vmatpush1.msra.mxu0 0.0
    %491 = vmatprep.subr.mxu0 0.0
    %492 = vmatpush1.msra.mxu0 0.0
    %493 = vmatprep.subr.mxu0 0.0
    %494 = vmatpush1.msra.mxu0 0.0
    %495 = vmatprep.subr.mxu0 0.0
    %496 = vmatpush1.msra.mxu0 0.0
    %497 = vmatprep.subr.mxu0 0.0
    %498 = vmatpush1.msra.mxu0 0.0
    %499 = vmatprep.subr.mxu0 0.0
    %500 = vmatpush1.msra.mxu0 0.0
    %501 = vmatprep.subr.mxu0 0.0
    %502 = vmatpush1.msra.mxu0 0.0
    %503 = vmatprep.subr.mxu0 0.0
    %504 = vmatpush1.msra.mxu0 0.0
    %505 = vmatprep.subr.mxu0 0.0
    %506 = vmatpush1.msra.mxu0 0.0
    %507 = vmatprep.subr.mxu0 0.0
    %508 = vmatpush1.msra.mxu0 0.0
    %509 = vmatprep.subr.mxu0 0.0
    %510 = vmatpush1.msra.mxu0 0.0
    %511 = vmatprep.subr.mxu0 0.0
    %512 = vmatpush1.msra.mxu0 0.0
    %513 = vmatprep.subr.mxu0 0.0
    %514 = vmatpush1.msra.mxu0 0.0
    %515 = vmatprep.subr.mxu0 0.0
    %516 = vmatpush1.msra.mxu0 0.0
    %517 = vmatprep.subr.mxu0 0.0
    %518 = vmatpush1.msra.mxu0 0.0
    %519 = vmatprep.subr.mxu0 0.0
    %520 = vmatpush1.msra.mxu0 0.0
    %521 = vmatprep.subr.mxu0 0.0
    %522 = vmatpush1.msra.mxu0 0.0
    %523 = vmatprep.subr.mxu0 0.0
    %524 = vmatpush1.msra.mxu0 0.0
    %525 = vmatprep.subr.mxu0 0.0
    %526 = vmatpush1.msra.mxu0 0.0
    %527 = vmatprep.subr.mxu0 0.0
    %528 = vmatpush1.msra.mxu0 0.0
    %529 = vmatprep.subr.mxu0 0.0
    %530 = vmatpush1.msra.mxu0 0.0
    %531 = vmatprep.mubr.f32.mxu0 0.0
    %v532 = vand.u32 %v171, 4294901760
    %533 = vmatmul.mubr.f32.gmra.mrb[0].mxu0 %v532
    %v534 = vpop.f32.mrb[0].mxu0
    %v535 = vadd.f32 %v294, %v534
    %v536 = vpop.f32.mrb[0].mxu0
    %537 = vmatprep.mubr.f32.mxu0 0.0
    %v538 = vand.u32 %v174, 4294901760
    %539 = vmatmul.mubr.f32.gmra.mrb[0].mxu0 %v538
    %v540 = vpop.f32.mrb[0].mxu0
    %v541 = vadd.f32 %v304, %v540
    %v542 = vpop.f32.mrb[0].mxu0
    %543 = vmatprep.mubr.f32.mxu0 0.0
    %v544 = vand.u32 %v177, 4294901760
    %545 = vmatmul.mubr.f32.gmra.mrb[0].mxu0 %v544
    %v546 = vpop.f32.mrb[0].mxu0
    %v547 = vadd.f32 %v314, %v546
    %v548 = vpop.f32.mrb[0].mxu0
    %549 = vmatprep.mubr.f32.mxu0 0.0
    %v550 = vand.u32 %v180, 4294901760
    %551 = vmatmul.mubr.f32.gmra.mrb[0].mxu0 %v550
    %v552 = vpop.f32.mrb[0].mxu0
    %v553 = vadd.f32 %v324, %v552
    %v554 = vpop.f32.mrb[0].mxu0
    %555 = vmatprep.mubr.f32.mxu0 0.0
    %v556 = vand.u32 %v183, 4294901760
    %557 = vmatmul.mubr.f32.gmra.mrb[0].mxu0 %v556
    %v558 = vpop.f32.mrb[0].mxu0
    %v559 = vadd.f32 %v334, %v558
    %v560 = vpop.f32.mrb[0].mxu0
    %561 = vmatprep.mubr.f32.mxu0 0.0
    %v562 = vand.u32 %v186, 4294901760
    %563 = vmatmul.mubr.f32.gmra.mrb[0].mxu0 %v562
    %v564 = vpop.f32.mrb[0].mxu0
    %v565 = vadd.f32 %v344, %v564
    %v566 = vpop.f32.mrb[0].mxu0
    %567 = vmatprep.mubr.f32.mxu0 0.0
    %v568 = vand.u32 %v189, 4294901760
    %569 = vmatmul.mubr.f32.gmra.mrb[0].mxu0 %v568
    %v570 = vpop.f32.mrb[0].mxu0
    %v571 = vadd.f32 %v354, %v570
    %v572 = vpop.f32.mrb[0].mxu0
    %573 = vmatprep.mubr.f32.mxu0 0.0
    %v574 = vand.u32 %v192, 4294901760
    %575 = vmatmul.mubr.f32.gmra.mrb[0].mxu0 %v574
    %v576 = vpop.f32.mrb[0].mxu0
    %v577 = vadd.f32 %v364, %v576
    %v578 = vpop.f32.mrb[0].mxu0
    %579 = vmatprep.mubr.f32.mxu0 0.0
    %v580 = vand.u32 %v195, 4294901760
    %581 = vmatmul.mubr.f32.gmra.mrb[0].mxu0 %v580
    %v582 = vpop.f32.mrb[0].mxu0
    %v583 = vadd.f32 %v374, %v582
    %v584 = vpop.f32.mrb[0].mxu0
    %585 = vmatprep.mubr.f32.mxu0 0.0
    %v586 = vand.u32 %v198, 4294901760
    %587 = vmatmul.mubr.f32.gmra.mrb[0].mxu0 %v586
    %v588 = vpop.f32.mrb[0].mxu0
    %v589 = vadd.f32 %v384, %v588
    %v590 = vpop.f32.mrb[0].mxu0
    %591 = vmatprep.mubr.f32.mxu0 0.0
    %v592 = vand.u32 %v201, 4294901760
    %593 = vmatmul.mubr.f32.gmra.mrb[0].mxu0 %v592
    %v594 = vpop.f32.mrb[0].mxu0
    %v595 = vadd.f32 %v394, %v594
    %v596 = vpop.f32.mrb[0].mxu0
    %597 = vmatprep.mubr.f32.mxu0 0.0
    %v598 = vand.u32 %v204, 4294901760
    %599 = vmatmul.mubr.f32.gmra.mrb[0].mxu0 %v598
    %v600 = vpop.f32.mrb[0].mxu0
    %v601 = vadd.f32 %v404, %v600
    %v602 = vpop.f32.mrb[0].mxu0
    %603 = vmatprep.mubr.f32.mxu0 0.0
    %v604 = vand.u32 %v207, 4294901760
    %605 = vmatmul.mubr.f32.gmra.mrb[0].mxu0 %v604
    %v606 = vpop.f32.mrb[0].mxu0
    %v607 = vadd.f32 %v414, %v606
    %v608 = vpop.f32.mrb[0].mxu0
    %609 = vmatprep.mubr.f32.mxu0 0.0
    %v610 = vand.u32 %v210, 4294901760
    %611 = vmatmul.mubr.f32.gmra.mrb[0].mxu0 %v610
    %v612 = vpop.f32.mrb[0].mxu0
    %v613 = vadd.f32 %v424, %v612
    %v614 = vpop.f32.mrb[0].mxu0
    %615 = vmatprep.mubr.f32.mxu0 0.0
    %v616 = vand.u32 %v213, 4294901760
    %617 = vmatmul.mubr.f32.gmra.mrb[0].mxu0 %v616
    %v618 = vpop.f32.mrb[0].mxu0
    %v619 = vadd.f32 %v434, %v618
    %v620 = vpop.f32.mrb[0].mxu0
    %621 = vmatprep.mubr.f32.mxu0 0.0
    %v622 = vand.u32 %v216, 4294901760
    %623 = vmatmul.mubr.f32.gmra.mrb[0].mxu0 %v622
    %v624 = vpop.f32.mrb[0].mxu0
    %v625 = vadd.f32 %v444, %v624
    %v626 = vpop.f32.mrb[0].mxu0
    %627 = vdwg.mxu0
    %628 = vmatprep.subr.mxu0 0.0
    %v629 = vand.u32 %v165, 4294901760
    %v630 = vsub.f32 %v165, %v629
    %631 = vmatpush1.msra.mxu0 %v630
    %632 = vmatprep.subr.mxu0 0.0
    %v633 = vand.u32 %v166, 4294901760
    %v634 = vsub.f32 %v166, %v633
    %635 = vmatpush1.msra.mxu0 %v634
    %636 = vmatprep.subr.mxu0 0.0
    %v637 = vand.u32 %v167, 4294901760
    %v638 = vsub.f32 %v167, %v637
    %639 = vmatpush1.msra.mxu0 %v638
    %640 = vmatprep.subr.mxu0 0.0
    %v641 = vand.u32 %v168, 4294901760
    %v642 = vsub.f32 %v168, %v641
    %643 = vmatpush1.msra.mxu0 %v642
    %644 = vmatprep.subr.mxu0 0.0
    %645 = vmatpush1.msra.mxu0 0.0
    %646 = vmatprep.subr.mxu0 0.0
    %647 = vmatpush1.msra.mxu0 0.0
    %648 = vmatprep.subr.mxu0 0.0
    %649 = vmatpush1.msra.mxu0 0.0
    %650 = vmatprep.subr.mxu0 0.0
    %651 = vmatpush1.msra.mxu0 0.0
    %652 = vmatprep.subr.mxu0 0.0
    %653 = vmatpush1.msra.mxu0 0.0
    %654 = vmatprep.subr.mxu0 0.0
    %655 = vmatpush1.msra.mxu0 0.0
    %656 = vmatprep.subr.mxu0 0.0
    %657 = vmatpush1.msra.mxu0 0.0
    %658 = vmatprep.subr.mxu0 0.0
    %659 = vmatpush1.msra.mxu0 0.0
    %660 = vmatprep.subr.mxu0 0.0
    %661 = vmatpush1.msra.mxu0 0.0
    %662 = vmatprep.subr.mxu0 0.0
    %663 = vmatpush1.msra.mxu0 0.0
    %664 = vmatprep.subr.mxu0 0.0
    %665 = vmatpush1.msra.mxu0 0.0
    %666 = vmatprep.subr.mxu0 0.0
    %667 = vmatpush1.msra.mxu0 0.0
    %668 = vmatprep.subr.mxu0 0.0
    %669 = vmatpush1.msra.mxu0 0.0
    %670 = vmatprep.subr.mxu0 0.0
    %671 = vmatpush1.msra.mxu0 0.0
    %672 = vmatprep.subr.mxu0 0.0
    %673 = vmatpush1.msra.mxu0 0.0
    %674 = vmatprep.subr.mxu0 0.0
    %675 = vmatpush1.msra.mxu0 0.0
    %676 = vmatprep.subr.mxu0 0.0
    %677 = vmatpush1.msra.mxu0 0.0
    %678 = vmatprep.subr.mxu0 0.0
    %679 = vmatpush1.msra.mxu0 0.0
    %680 = vmatprep.subr.mxu0 0.0
    %681 = vmatpush1.msra.mxu0 0.0
    %682 = vmatprep.subr.mxu0 0.0
    %683 = vmatpush1.msra.mxu0 0.0
    %684 = vmatprep.subr.mxu0 0.0
    %685 = vmatpush1.msra.mxu0 0.0
    %686 = vmatprep.subr.mxu0 0.0
    %687 = vmatpush1.msra.mxu0 0.0
    %688 = vmatprep.subr.mxu0 0.0
    %689 = vmatpush1.msra.mxu0 0.0
    %690 = vmatprep.subr.mxu0 0.0
    %691 = vmatpush1.msra.mxu0 0.0
    %692 = vmatprep.subr.mxu0 0.0
    %693 = vmatpush1.msra.mxu0 0.0
    %694 = vmatprep.subr.mxu0 0.0
    %695 = vmatpush1.msra.mxu0 0.0
    %696 = vmatprep.subr.mxu0 0.0
    %697 = vmatpush1.msra.mxu0 0.0
    %698 = vmatprep.subr.mxu0 0.0
    %699 = vmatpush1.msra.mxu0 0.0
    %700 = vmatprep.mubr.f32.mxu0 0.0
    %v701 = vand.u32 %v171, 4294901760
    %v702 = vsub.f32 %v171, %v701
    %703 = vmatmul.mubr.f32.gmra.mrb[0].mxu0 %v702
    %v704 = vpop.f32.mrb[0].mxu0
    %v705 = vadd.f32 %v535, %v704
    %v706 = vpop.f32.mrb[0].mxu0
    %707 = vmatprep.mubr.f32.mxu0 0.0
    %v708 = vand.u32 %v174, 4294901760
    %v709 = vsub.f32 %v174, %v708
    %710 = vmatmul.mubr.f32.gmra.mrb[0].mxu0 %v709
    %v711 = vpop.f32.mrb[0].mxu0
    %v712 = vadd.f32 %v541, %v711
    %v713 = vpop.f32.mrb[0].mxu0
    %714 = vmatprep.mubr.f32.mxu0 0.0
    %v715 = vand.u32 %v177, 4294901760
    %v716 = vsub.f32 %v177, %v715
    %717 = vmatmul.mubr.f32.gmra.mrb[0].mxu0 %v716
    %v718 = vpop.f32.mrb[0].mxu0
    %v719 = vadd.f32 %v547, %v718
    %v720 = vpop.f32.mrb[0].mxu0
    %721 = vmatprep.mubr.f32.mxu0 0.0
    %v722 = vand.u32 %v180, 4294901760
    %v723 = vsub.f32 %v180, %v722
    %724 = vmatmul.mubr.f32.gmra.mrb[0].mxu0 %v723
    %v725 = vpop.f32.mrb[0].mxu0
    %v726 = vadd.f32 %v553, %v725
    %v727 = vpop.f32.mrb[0].mxu0
    %728 = vmatprep.mubr.f32.mxu0 0.0
    %v729 = vand.u32 %v183, 4294901760
    %v730 = vsub.f32 %v183, %v729
    %731 = vmatmul.mubr.f32.gmra.mrb[0].mxu0 %v730
    %v732 = vpop.f32.mrb[0].mxu0
    %v733 = vadd.f32 %v559, %v732
    %v734 = vpop.f32.mrb[0].mxu0
    %735 = vmatprep.mubr.f32.mxu0 0.0
    %v736 = vand.u32 %v186, 4294901760
    %v737 = vsub.f32 %v186, %v736
    %738 = vmatmul.mubr.f32.gmra.mrb[0].mxu0 %v737
    %v739 = vpop.f32.mrb[0].mxu0
    %v740 = vadd.f32 %v565, %v739
    %v741 = vpop.f32.mrb[0].mxu0
    %742 = vmatprep.mubr.f32.mxu0 0.0
    %v743 = vand.u32 %v189, 4294901760
    %v744 = vsub.f32 %v189, %v743
    %745 = vmatmul.mubr.f32.gmra.mrb[0].mxu0 %v744
    %v746 = vpop.f32.mrb[0].mxu0
    %v747 = vadd.f32 %v571, %v746
    %v748 = vpop.f32.mrb[0].mxu0
    %749 = vmatprep.mubr.f32.mxu0 0.0
    %v750 = vand.u32 %v192, 4294901760
    %v751 = vsub.f32 %v192, %v750
    %752 = vmatmul.mubr.f32.gmra.mrb[0].mxu0 %v751
    %v753 = vpop.f32.mrb[0].mxu0
    %v754 = vadd.f32 %v577, %v753
    %v755 = vpop.f32.mrb[0].mxu0
    %756 = vmatprep.mubr.f32.mxu0 0.0
    %v757 = vand.u32 %v195, 4294901760
    %v758 = vsub.f32 %v195, %v757
    %759 = vmatmul.mubr.f32.gmra.mrb[0].mxu0 %v758
    %v760 = vpop.f32.mrb[0].mxu0
    %v761 = vadd.f32 %v583, %v760
    %v762 = vpop.f32.mrb[0].mxu0
    %763 = vmatprep.mubr.f32.mxu0 0.0
    %v764 = vand.u32 %v198, 4294901760
    %v765 = vsub.f32 %v198, %v764
    %766 = vmatmul.mubr.f32.gmra.mrb[0].mxu0 %v765
    %v767 = vpop.f32.mrb[0].mxu0
    %v768 = vadd.f32 %v589, %v767
    %v769 = vpop.f32.mrb[0].mxu0
    %770 = vmatprep.mubr.f32.mxu0 0.0
    %v771 = vand.u32 %v201, 4294901760
    %v772 = vsub.f32 %v201, %v771
    %773 = vmatmul.mubr.f32.gmra.mrb[0].mxu0 %v772
    %v774 = vpop.f32.mrb[0].mxu0
    %v775 = vadd.f32 %v595, %v774
    %v776 = vpop.f32.mrb[0].mxu0
    %777 = vmatprep.mubr.f32.mxu0 0.0
    %v778 = vand.u32 %v204, 4294901760
    %v779 = vsub.f32 %v204, %v778
    %780 = vmatmul.mubr.f32.gmra.mrb[0].mxu0 %v779
    %v781 = vpop.f32.mrb[0].mxu0
    %v782 = vadd.f32 %v601, %v781
    %v783 = vpop.f32.mrb[0].mxu0
    %784 = vmatprep.mubr.f32.mxu0 0.0
    %v785 = vand.u32 %v207, 4294901760
    %v786 = vsub.f32 %v207, %v785
    %787 = vmatmul.mubr.f32.gmra.mrb[0].mxu0 %v786
    %v788 = vpop.f32.mrb[0].mxu0
    %v789 = vadd.f32 %v607, %v788
    %v790 = vpop.f32.mrb[0].mxu0
    %791 = vmatprep.mubr.f32.mxu0 0.0
    %v792 = vand.u32 %v210, 4294901760
    %v793 = vsub.f32 %v210, %v792
    %794 = vmatmul.mubr.f32.gmra.mrb[0].mxu0 %v793
    %v795 = vpop.f32.mrb[0].mxu0
    %v796 = vadd.f32 %v613, %v795
    %v797 = vpop.f32.mrb[0].mxu0
    %798 = vmatprep.mubr.f32.mxu0 0.0
    %v799 = vand.u32 %v213, 4294901760
    %v800 = vsub.f32 %v213, %v799
    %801 = vmatmul.mubr.f32.gmra.mrb[0].mxu0 %v800
    %v802 = vpop.f32.mrb[0].mxu0
    %v803 = vadd.f32 %v619, %v802
    %v804 = vpop.f32.mrb[0].mxu0
    %805 = vmatprep.mubr.f32.mxu0 0.0
    %v806 = vand.u32 %v216, 4294901760
    %v807 = vsub.f32 %v216, %v806
    %808 = vmatmul.mubr.f32.gmra.mrb[0].mxu0 %v807
    %v809 = vpop.f32.mrb[0].mxu0
    %v810 = vadd.f32 %v625, %v809
    %v811 = vpop.f32.mrb[0].mxu0
    %812 = vdwg.mxu0
    %813 = vmatprep.subr.mxu0 0.0
    %v814 = vand.u32 %v165, 4294901760
    %815 = vmatpush1.msra.mxu0 %v814
    %816 = vmatprep.subr.mxu0 0.0
    %v817 = vand.u32 %v166, 4294901760
    %818 = vmatpush1.msra.mxu0 %v817
    %819 = vmatprep.subr.mxu0 0.0
    %v820 = vand.u32 %v167, 4294901760
    %821 = vmatpush1.msra.mxu0 %v820
    %822 = vmatprep.subr.mxu0 0.0
    %v823 = vand.u32 %v168, 4294901760
    %824 = vmatpush1.msra.mxu0 %v823
    %825 = vmatprep.subr.mxu0 0.0
    %826 = vmatpush1.msra.mxu0 0.0
    %827 = vmatprep.subr.mxu0 0.0
    %828 = vmatpush1.msra.mxu0 0.0
    %829 = vmatprep.subr.mxu0 0.0
    %830 = vmatpush1.msra.mxu0 0.0
    %831 = vmatprep.subr.mxu0 0.0
    %832 = vmatpush1.msra.mxu0 0.0
    %833 = vmatprep.subr.mxu0 0.0
    %834 = vmatpush1.msra.mxu0 0.0
    %835 = vmatprep.subr.mxu0 0.0
    %836 = vmatpush1.msra.mxu0 0.0
    %837 = vmatprep.subr.mxu0 0.0
    %838 = vmatpush1.msra.mxu0 0.0
    %839 = vmatprep.subr.mxu0 0.0
    %840 = vmatpush1.msra.mxu0 0.0
    %841 = vmatprep.subr.mxu0 0.0
    %842 = vmatpush1.msra.mxu0 0.0
    %843 = vmatprep.subr.mxu0 0.0
    %844 = vmatpush1.msra.mxu0 0.0
    %845 = vmatprep.subr.mxu0 0.0
    %846 = vmatpush1.msra.mxu0 0.0
    %847 = vmatprep.subr.mxu0 0.0
    %848 = vmatpush1.msra.mxu0 0.0
    %849 = vmatprep.subr.mxu0 0.0
    %850 = vmatpush1.msra.mxu0 0.0
    %851 = vmatprep.subr.mxu0 0.0
    %852 = vmatpush1.msra.mxu0 0.0
    %853 = vmatprep.subr.mxu0 0.0
    %854 = vmatpush1.msra.mxu0 0.0
    %855 = vmatprep.subr.mxu0 0.0
    %856 = vmatpush1.msra.mxu0 0.0
    %857 = vmatprep.subr.mxu0 0.0
    %858 = vmatpush1.msra.mxu0 0.0
    %859 = vmatprep.subr.mxu0 0.0
    %860 = vmatpush1.msra.mxu0 0.0
    %861 = vmatprep.subr.mxu0 0.0
    %862 = vmatpush1.msra.mxu0 0.0
    %863 = vmatprep.subr.mxu0 0.0
    %864 = vmatpush1.msra.mxu0 0.0
    %865 = vmatprep.subr.mxu0 0.0
    %866 = vmatpush1.msra.mxu0 0.0
    %867 = vmatprep.subr.mxu0 0.0
    %868 = vmatpush1.msra.mxu0 0.0
    %869 = vmatprep.subr.mxu0 0.0
    %870 = vmatpush1.msra.mxu0 0.0
    %871 = vmatprep.subr.mxu0 0.0
    %872 = vmatpush1.msra.mxu0 0.0
    %873 = vmatprep.subr.mxu0 0.0
    %874 = vmatpush1.msra.mxu0 0.0
    %875 = vmatprep.subr.mxu0 0.0
    %876 = vmatpush1.msra.mxu0 0.0
    %877 = vmatprep.subr.mxu0 0.0
    %878 = vmatpush1.msra.mxu0 0.0
    %879 = vmatprep.subr.mxu0 0.0
    %880 = vmatpush1.msra.mxu0 0.0
    %881 = vmatprep.mubr.f32.mxu0 0.0
    %v882 = vand.u32 %v171, 4294901760
    %v883 = vsub.f32 %v171, %v882
    %v884 = vand.u32 %v883, 4294901760
    %885 = vmatmul.mubr.f32.gmra.mrb[0].mxu0 %v884
    %v886 = vpop.f32.mrb[0].mxu0
    %v887 = vadd.f32 %v705, %v886
    %v888 = vpop.f32.mrb[0].mxu0
    %889 = vmatprep.mubr.f32.mxu0 0.0
    %v890 = vand.u32 %v174, 4294901760
    %v891 = vsub.f32 %v174, %v890
    %v892 = vand.u32 %v891, 4294901760
    %893 = vmatmul.mubr.f32.gmra.mrb[0].mxu0 %v892
    %v894 = vpop.f32.mrb[0].mxu0
    %v895 = vadd.f32 %v712, %v894
    %v896 = vpop.f32.mrb[0].mxu0
    %897 = vmatprep.mubr.f32.mxu0 0.0
    %v898 = vand.u32 %v177, 4294901760
    %v899 = vsub.f32 %v177, %v898
    %v900 = vand.u32 %v899, 4294901760
    %901 = vmatmul.mubr.f32.gmra.mrb[0].mxu0 %v900
    %v902 = vpop.f32.mrb[0].mxu0
    %v903 = vadd.f32 %v719, %v902
    %v904 = vpop.f32.mrb[0].mxu0
    %905 = vmatprep.mubr.f32.mxu0 0.0
    %v906 = vand.u32 %v180, 4294901760
    %v907 = vsub.f32 %v180, %v906
    %v908 = vand.u32 %v907, 4294901760
    %909 = vmatmul.mubr.f32.gmra.mrb[0].mxu0 %v908
    %v910 = vpop.f32.mrb[0].mxu0
    %v911 = vadd.f32 %v726, %v910
    %v912 = vpop.f32.mrb[0].mxu0
    %913 = vmatprep.mubr.f32.mxu0 0.0
    %v914 = vand.u32 %v183, 4294901760
    %v915 = vsub.f32 %v183, %v914
    %v916 = vand.u32 %v915, 4294901760
    %917 = vmatmul.mubr.f32.gmra.mrb[0].mxu0 %v916
    %v918 = vpop.f32.mrb[0].mxu0
    %v919 = vadd.f32 %v733, %v918
    %v920 = vpop.f32.mrb[0].mxu0
    %921 = vmatprep.mubr.f32.mxu0 0.0
    %v922 = vand.u32 %v186, 4294901760
    %v923 = vsub.f32 %v186, %v922
    %v924 = vand.u32 %v923, 4294901760
    %925 = vmatmul.mubr.f32.gmra.mrb[0].mxu0 %v924
    %v926 = vpop.f32.mrb[0].mxu0
    %v927 = vadd.f32 %v740, %v926
    %v928 = vpop.f32.mrb[0].mxu0
    %929 = vmatprep.mubr.f32.mxu0 0.0
    %v930 = vand.u32 %v189, 4294901760
    %v931 = vsub.f32 %v189, %v930
    %v932 = vand.u32 %v931, 4294901760
    %933 = vmatmul.mubr.f32.gmra.mrb[0].mxu0 %v932
    %v934 = vpop.f32.mrb[0].mxu0
    %v935 = vadd.f32 %v747, %v934
    %v936 = vpop.f32.mrb[0].mxu0
    %937 = vmatprep.mubr.f32.mxu0 0.0
    %v938 = vand.u32 %v192, 4294901760
    %v939 = vsub.f32 %v192, %v938
    %v940 = vand.u32 %v939, 4294901760
    %941 = vmatmul.mubr.f32.gmra.mrb[0].mxu0 %v940
    %v942 = vpop.f32.mrb[0].mxu0
    %v943 = vadd.f32 %v754, %v942
    %v944 = vpop.f32.mrb[0].mxu0
    %945 = vmatprep.mubr.f32.mxu0 0.0
    %v946 = vand.u32 %v195, 4294901760
    %v947 = vsub.f32 %v195, %v946
    %v948 = vand.u32 %v947, 4294901760
    %949 = vmatmul.mubr.f32.gmra.mrb[0].mxu0 %v948
    %v950 = vpop.f32.mrb[0].mxu0
    %v951 = vadd.f32 %v761, %v950
    %v952 = vpop.f32.mrb[0].mxu0
    %953 = vmatprep.mubr.f32.mxu0 0.0
    %v954 = vand.u32 %v198, 4294901760
    %v955 = vsub.f32 %v198, %v954
    %v956 = vand.u32 %v955, 4294901760
    %957 = vmatmul.mubr.f32.gmra.mrb[0].mxu0 %v956
    %v958 = vpop.f32.mrb[0].mxu0
    %v959 = vadd.f32 %v768, %v958
    %v960 = vpop.f32.mrb[0].mxu0
    %961 = vmatprep.mubr.f32.mxu0 0.0
    %v962 = vand.u32 %v201, 4294901760
    %v963 = vsub.f32 %v201, %v962
    %v964 = vand.u32 %v963, 4294901760
    %965 = vmatmul.mubr.f32.gmra.mrb[0].mxu0 %v964
    %v966 = vpop.f32.mrb[0].mxu0
    %v967 = vadd.f32 %v775, %v966
    %v968 = vpop.f32.mrb[0].mxu0
    %969 = vmatprep.mubr.f32.mxu0 0.0
    %v970 = vand.u32 %v204, 4294901760
    %v971 = vsub.f32 %v204, %v970
    %v972 = vand.u32 %v971, 4294901760
    %973 = vmatmul.mubr.f32.gmra.mrb[0].mxu0 %v972
    %v974 = vpop.f32.mrb[0].mxu0
    %v975 = vadd.f32 %v782, %v974
    %v976 = vpop.f32.mrb[0].mxu0
    %977 = vmatprep.mubr.f32.mxu0 0.0
    %v978 = vand.u32 %v207, 4294901760
    %v979 = vsub.f32 %v207, %v978
    %v980 = vand.u32 %v979, 4294901760
    %981 = vmatmul.mubr.f32.gmra.mrb[0].mxu0 %v980
    %v982 = vpop.f32.mrb[0].mxu0
    %v983 = vadd.f32 %v789, %v982
    %v984 = vpop.f32.mrb[0].mxu0
    %985 = vmatprep.mubr.f32.mxu0 0.0
    %v986 = vand.u32 %v210, 4294901760
    %v987 = vsub.f32 %v210, %v986
    %v988 = vand.u32 %v987, 4294901760
    %989 = vmatmul.mubr.f32.gmra.mrb[0].mxu0 %v988
    %v990 = vpop.f32.mrb[0].mxu0
    %v991 = vadd.f32 %v796, %v990
    %v992 = vpop.f32.mrb[0].mxu0
    %993 = vmatprep.mubr.f32.mxu0 0.0
    %v994 = vand.u32 %v213, 4294901760
    %v995 = vsub.f32 %v213, %v994
    %v996 = vand.u32 %v995, 4294901760
    %997 = vmatmul.mubr.f32.gmra.mrb[0].mxu0 %v996
    %v998 = vpop.f32.mrb[0].mxu0
    %v999 = vadd.f32 %v803, %v998
    %v1000 = vpop.f32.mrb[0].mxu0
    %1001 = vmatprep.mubr.f32.mxu0 0.0
    %v1002 = vand.u32 %v216, 4294901760
    %v1003 = vsub.f32 %v216, %v1002
    %v1004 = vand.u32 %v1003, 4294901760
    %1005 = vmatmul.mubr.f32.gmra.mrb[0].mxu0 %v1004
    %v1006 = vpop.f32.mrb[0].mxu0
    %v1007 = vadd.f32 %v810, %v1006
    %v1008 = vpop.f32.mrb[0].mxu0
    %1009 = vdwg.mxu0
    %1010 = vmatprep.subr.mxu0 0.0
    %v1011 = vand.u32 %v165, 4294901760
    %v1012 = vsub.f32 %v165, %v1011
    %v1013 = vand.u32 %v1012, 4294901760
    %1014 = vmatpush1.msra.mxu0 %v1013
    %1015 = vmatprep.subr.mxu0 0.0
    %v1016 = vand.u32 %v166, 4294901760
    %v1017 = vsub.f32 %v166, %v1016
    %v1018 = vand.u32 %v1017, 4294901760
    %1019 = vmatpush1.msra.mxu0 %v1018
    %1020 = vmatprep.subr.mxu0 0.0
    %v1021 = vand.u32 %v167, 4294901760
    %v1022 = vsub.f32 %v167, %v1021
    %v1023 = vand.u32 %v1022, 4294901760
    %1024 = vmatpush1.msra.mxu0 %v1023
    %1025 = vmatprep.subr.mxu0 0.0
    %v1026 = vand.u32 %v168, 4294901760
    %v1027 = vsub.f32 %v168, %v1026
    %v1028 = vand.u32 %v1027, 4294901760
    %1029 = vmatpush1.msra.mxu0 %v1028
    %1030 = vmatprep.subr.mxu0 0.0
    %1031 = vmatpush1.msra.mxu0 0.0
    %1032 = vmatprep.subr.mxu0 0.0
    %1033 = vmatpush1.msra.mxu0 0.0
    %1034 = vmatprep.subr.mxu0 0.0
    %1035 = vmatpush1.msra.mxu0 0.0
    %1036 = vmatprep.subr.mxu0 0.0
    %1037 = vmatpush1.msra.mxu0 0.0
    %1038 = vmatprep.subr.mxu0 0.0
    %1039 = vmatpush1.msra.mxu0 0.0
    %1040 = vmatprep.subr.mxu0 0.0
    %1041 = vmatpush1.msra.mxu0 0.0
    %1042 = vmatprep.subr.mxu0 0.0
    %1043 = vmatpush1.msra.mxu0 0.0
    %1044 = vmatprep.subr.mxu0 0.0
    %1045 = vmatpush1.msra.mxu0 0.0
    %1046 = vmatprep.subr.mxu0 0.0
    %1047 = vmatpush1.msra.mxu0 0.0
    %1048 = vmatprep.subr.mxu0 0.0
    %1049 = vmatpush1.msra.mxu0 0.0
    %1050 = vmatprep.subr.mxu0 0.0
    %1051 = vmatpush1.msra.mxu0 0.0
    %1052 = vmatprep.subr.mxu0 0.0
    %1053 = vmatpush1.msra.mxu0 0.0
    %1054 = vmatprep.subr.mxu0 0.0
    %1055 = vmatpush1.msra.mxu0 0.0
    %1056 = vmatprep.subr.mxu0 0.0
    %1057 = vmatpush1.msra.mxu0 0.0
    %1058 = vmatprep.subr.mxu0 0.0
    %1059 = vmatpush1.msra.mxu0 0.0
    %1060 = vmatprep.subr.mxu0 0.0
    %1061 = vmatpush1.msra.mxu0 0.0
    %1062 = vmatprep.subr.mxu0 0.0
    %1063 = vmatpush1.msra.mxu0 0.0
    %1064 = vmatprep.subr.mxu0 0.0
    %1065 = vmatpush1.msra.mxu0 0.0
    %1066 = vmatprep.subr.mxu0 0.0
    %1067 = vmatpush1.msra.mxu0 0.0
    %1068 = vmatprep.subr.mxu0 0.0
    %1069 = vmatpush1.msra.mxu0 0.0
    %1070 = vmatprep.subr.mxu0 0.0
    %1071 = vmatpush1.msra.mxu0 0.0
    %1072 = vmatprep.subr.mxu0 0.0
    %1073 = vmatpush1.msra.mxu0 0.0
    %1074 = vmatprep.subr.mxu0 0.0
    %1075 = vmatpush1.msra.mxu0 0.0
    %1076 = vmatprep.subr.mxu0 0.0
    %1077 = vmatpush1.msra.mxu0 0.0
    %1078 = vmatprep.subr.mxu0 0.0
    %1079 = vmatpush1.msra.mxu0 0.0
    %1080 = vmatprep.subr.mxu0 0.0
    %1081 = vmatpush1.msra.mxu0 0.0
    %1082 = vmatprep.subr.mxu0 0.0
    %1083 = vmatpush1.msra.mxu0 0.0
    %1084 = vmatprep.subr.mxu0 0.0
    %1085 = vmatpush1.msra.mxu0 0.0
    %1086 = vmatprep.mubr.f32.mxu0 0.0
    %v1087 = vand.u32 %v171, 4294901760
    %1088 = vmatmul.mubr.f32.gmra.mrb[0].mxu0 %v1087
    %v1089 = vpop.f32.mrb[0].mxu0
    %v1090 = vadd.f32 %v887, %v1089
    %v1091 = vpop.f32.mrb[0].mxu0
    %1092 = vmatprep.mubr.f32.mxu0 0.0
    %v1093 = vand.u32 %v174, 4294901760
    %1094 = vmatmul.mubr.f32.gmra.mrb[0].mxu0 %v1093
    %v1095 = vpop.f32.mrb[0].mxu0
    %v1096 = vadd.f32 %v895, %v1095
    %v1097 = vpop.f32.mrb[0].mxu0
    %1098 = vmatprep.mubr.f32.mxu0 0.0
    %v1099 = vand.u32 %v177, 4294901760
    %1100 = vmatmul.mubr.f32.gmra.mrb[0].mxu0 %v1099
    %v1101 = vpop.f32.mrb[0].mxu0
    %v1102 = vadd.f32 %v903, %v1101
    %v1103 = vpop.f32.mrb[0].mxu0
    %1104 = vmatprep.mubr.f32.mxu0 0.0
    %v1105 = vand.u32 %v180, 4294901760
    %1106 = vmatmul.mubr.f32.gmra.mrb[0].mxu0 %v1105
    %v1107 = vpop.f32.mrb[0].mxu0
    %v1108 = vadd.f32 %v911, %v1107
    %v1109 = vpop.f32.mrb[0].mxu0
    %1110 = vmatprep.mubr.f32.mxu0 0.0
    %v1111 = vand.u32 %v183, 4294901760
    %1112 = vmatmul.mubr.f32.gmra.mrb[0].mxu0 %v1111
    %v1113 = vpop.f32.mrb[0].mxu0
    %v1114 = vadd.f32 %v919, %v1113
    %v1115 = vpop.f32.mrb[0].mxu0
    %1116 = vmatprep.mubr.f32.mxu0 0.0
    %v1117 = vand.u32 %v186, 4294901760
    %1118 = vmatmul.mubr.f32.gmra.mrb[0].mxu0 %v1117
    %v1119 = vpop.f32.mrb[0].mxu0
    %v1120 = vadd.f32 %v927, %v1119
    %v1121 = vpop.f32.mrb[0].mxu0
    %1122 = vmatprep.mubr.f32.mxu0 0.0
    %v1123 = vand.u32 %v189, 4294901760
    %1124 = vmatmul.mubr.f32.gmra.mrb[0].mxu0 %v1123
    %v1125 = vpop.f32.mrb[0].mxu0
    %v1126 = vadd.f32 %v935, %v1125
    %v1127 = vpop.f32.mrb[0].mxu0
    %1128 = vmatprep.mubr.f32.mxu0 0.0
    %v1129 = vand.u32 %v192, 4294901760
    %1130 = vmatmul.mubr.f32.gmra.mrb[0].mxu0 %v1129
    %v1131 = vpop.f32.mrb[0].mxu0
    %v1132 = vadd.f32 %v943, %v1131
    %v1133 = vpop.f32.mrb[0].mxu0
    %1134 = vmatprep.mubr.f32.mxu0 0.0
    %v1135 = vand.u32 %v195, 4294901760
    %1136 = vmatmul.mubr.f32.gmra.mrb[0].mxu0 %v1135
    %v1137 = vpop.f32.mrb[0].mxu0
    %v1138 = vadd.f32 %v951, %v1137
    %v1139 = vpop.f32.mrb[0].mxu0
    %1140 = vmatprep.mubr.f32.mxu0 0.0
    %v1141 = vand.u32 %v198, 4294901760
    %1142 = vmatmul.mubr.f32.gmra.mrb[0].mxu0 %v1141
    %v1143 = vpop.f32.mrb[0].mxu0
    %v1144 = vadd.f32 %v959, %v1143
    %v1145 = vpop.f32.mrb[0].mxu0
    %1146 = vmatprep.mubr.f32.mxu0 0.0
    %v1147 = vand.u32 %v201, 4294901760
    %1148 = vmatmul.mubr.f32.gmra.mrb[0].mxu0 %v1147
    %v1149 = vpop.f32.mrb[0].mxu0
    %v1150 = vadd.f32 %v967, %v1149
    %v1151 = vpop.f32.mrb[0].mxu0
    %1152 = vmatprep.mubr.f32.mxu0 0.0
    %v1153 = vand.u32 %v204, 4294901760
    %1154 = vmatmul.mubr.f32.gmra.mrb[0].mxu0 %v1153
    %v1155 = vpop.f32.mrb[0].mxu0
    %v1156 = vadd.f32 %v975, %v1155
    %v1157 = vpop.f32.mrb[0].mxu0
    %1158 = vmatprep.mubr.f32.mxu0 0.0
    %v1159 = vand.u32 %v207, 4294901760
    %1160 = vmatmul.mubr.f32.gmra.mrb[0].mxu0 %v1159
    %v1161 = vpop.f32.mrb[0].mxu0
    %v1162 = vadd.f32 %v983, %v1161
    %v1163 = vpop.f32.mrb[0].mxu0
    %1164 = vmatprep.mubr.f32.mxu0 0.0
    %v1165 = vand.u32 %v210, 4294901760
    %1166 = vmatmul.mubr.f32.gmra.mrb[0].mxu0 %v1165
    %v1167 = vpop.f32.mrb[0].mxu0
    %v1168 = vadd.f32 %v991, %v1167
    %v1169 = vpop.f32.mrb[0].mxu0
    %1170 = vmatprep.mubr.f32.mxu0 0.0
    %v1171 = vand.u32 %v213, 4294901760
    %1172 = vmatmul.mubr.f32.gmra.mrb[0].mxu0 %v1171
    %v1173 = vpop.f32.mrb[0].mxu0
    %v1174 = vadd.f32 %v999, %v1173
    %v1175 = vpop.f32.mrb[0].mxu0
    %1176 = vmatprep.mubr.f32.mxu0 0.0
    %v1177 = vand.u32 %v216, 4294901760
    %1178 = vmatmul.mubr.f32.gmra.mrb[0].mxu0 %v1177
    %v1179 = vpop.f32.mrb[0].mxu0
    %v1180 = vadd.f32 %v1007, %v1179
    %v1181 = vpop.f32.mrb[0].mxu0
    %1182 = vdwg.mxu0
    %1183 = vmatprep.subr.mxu0 0.0
    %v1184 = vand.u32 %v165, 4294901760
    %1185 = vmatpush1.msra.mxu0 %v1184
    %1186 = vmatprep.subr.mxu0 0.0
    %v1187 = vand.u32 %v166, 4294901760
    %1188 = vmatpush1.msra.mxu0 %v1187
    %1189 = vmatprep.subr.mxu0 0.0
    %v1190 = vand.u32 %v167, 4294901760
    %1191 = vmatpush1.msra.mxu0 %v1190
    %1192 = vmatprep.subr.mxu0 0.0
    %v1193 = vand.u32 %v168, 4294901760
    %1194 = vmatpush1.msra.mxu0 %v1193
    %1195 = vmatprep.subr.mxu0 0.0
    %1196 = vmatpush1.msra.mxu0 0.0
    %1197 = vmatprep.subr.mxu0 0.0
    %1198 = vmatpush1.msra.mxu0 0.0
    %1199 = vmatprep.subr.mxu0 0.0
    %1200 = vmatpush1.msra.mxu0 0.0
    %1201 = vmatprep.subr.mxu0 0.0
    %1202 = vmatpush1.msra.mxu0 0.0
    %1203 = vmatprep.subr.mxu0 0.0
    %1204 = vmatpush1.msra.mxu0 0.0
    %1205 = vmatprep.subr.mxu0 0.0
    %1206 = vmatpush1.msra.mxu0 0.0
    %1207 = vmatprep.subr.mxu0 0.0
    %1208 = vmatpush1.msra.mxu0 0.0
    %1209 = vmatprep.subr.mxu0 0.0
    %1210 = vmatpush1.msra.mxu0 0.0
    %1211 = vmatprep.subr.mxu0 0.0
    %1212 = vmatpush1.msra.mxu0 0.0
    %1213 = vmatprep.subr.mxu0 0.0
    %1214 = vmatpush1.msra.mxu0 0.0
    %1215 = vmatprep.subr.mxu0 0.0
    %1216 = vmatpush1.msra.mxu0 0.0
    %1217 = vmatprep.subr.mxu0 0.0
    %1218 = vmatpush1.msra.mxu0 0.0
    %1219 = vmatprep.subr.mxu0 0.0
    %1220 = vmatpush1.msra.mxu0 0.0
    %1221 = vmatprep.subr.mxu0 0.0
    %1222 = vmatpush1.msra.mxu0 0.0
    %1223 = vmatprep.subr.mxu0 0.0
    %1224 = vmatpush1.msra.mxu0 0.0
    %1225 = vmatprep.subr.mxu0 0.0
    %1226 = vmatpush1.msra.mxu0 0.0
    %1227 = vmatprep.subr.mxu0 0.0
    %1228 = vmatpush1.msra.mxu0 0.0
    %1229 = vmatprep.subr.mxu0 0.0
    %1230 = vmatpush1.msra.mxu0 0.0
    %1231 = vmatprep.subr.mxu0 0.0
    %1232 = vmatpush1.msra.mxu0 0.0
    %1233 = vmatprep.subr.mxu0 0.0
    %1234 = vmatpush1.msra.mxu0 0.0
    %1235 = vmatprep.subr.mxu0 0.0
    %1236 = vmatpush1.msra.mxu0 0.0
    %1237 = vmatprep.subr.mxu0 0.0
    %1238 = vmatpush1.msra.mxu0 0.0
    %1239 = vmatprep.subr.mxu0 0.0
    %1240 = vmatpush1.msra.mxu0 0.0
    %1241 = vmatprep.subr.mxu0 0.0
    %1242 = vmatpush1.msra.mxu0 0.0
    %1243 = vmatprep.subr.mxu0 0.0
    %1244 = vmatpush1.msra.mxu0 0.0
    %1245 = vmatprep.subr.mxu0 0.0
    %1246 = vmatpush1.msra.mxu0 0.0
    %1247 = vmatprep.subr.mxu0 0.0
    %1248 = vmatpush1.msra.mxu0 0.0
    %1249 = vmatprep.subr.mxu0 0.0
    %1250 = vmatpush1.msra.mxu0 0.0
    %1251 = vmatprep.mubr.f32.mxu0 0.0
    %v1252 = vand.u32 %v171, 4294901760
    %1253 = vmatmul.mubr.f32.gmra.mrb[0].mxu0 %v1252
    %v1254 = vpop.f32.mrb[0].mxu0
    %v1255 = vadd.f32 %v1090, %v1254
    %v1256 = vpop.f32.mrb[0].mxu0
    %1257 = vmatprep.mubr.f32.mxu0 0.0
    %v1258 = vand.u32 %v174, 4294901760
    %1259 = vmatmul.mubr.f32.gmra.mrb[0].mxu0 %v1258
    %v1260 = vpop.f32.mrb[0].mxu0
    %v1261 = vadd.f32 %v1096, %v1260
    %v1262 = vpop.f32.mrb[0].mxu0
    %1263 = vmatprep.mubr.f32.mxu0 0.0
    %v1264 = vand.u32 %v177, 4294901760
    %1265 = vmatmul.mubr.f32.gmra.mrb[0].mxu0 %v1264
    %v1266 = vpop.f32.mrb[0].mxu0
    %v1267 = vadd.f32 %v1102, %v1266
    %v1268 = vpop.f32.mrb[0].mxu0
    %1269 = vmatprep.mubr.f32.mxu0 0.0
    %v1270 = vand.u32 %v180, 4294901760
    %1271 = vmatmul.mubr.f32.gmra.mrb[0].mxu0 %v1270
    %v1272 = vpop.f32.mrb[0].mxu0
    %v1273 = vadd.f32 %v1108, %v1272
    %v1274 = vpop.f32.mrb[0].mxu0
    %1275 = vmatprep.mubr.f32.mxu0 0.0
    %v1276 = vand.u32 %v183, 4294901760
    %1277 = vmatmul.mubr.f32.gmra.mrb[0].mxu0 %v1276
    %v1278 = vpop.f32.mrb[0].mxu0
    %v1279 = vadd.f32 %v1114, %v1278
    %v1280 = vpop.f32.mrb[0].mxu0
    %1281 = vmatprep.mubr.f32.mxu0 0.0
    %v1282 = vand.u32 %v186, 4294901760
    %1283 = vmatmul.mubr.f32.gmra.mrb[0].mxu0 %v1282
    %v1284 = vpop.f32.mrb[0].mxu0
    %v1285 = vadd.f32 %v1120, %v1284
    %v1286 = vpop.f32.mrb[0].mxu0
    %1287 = vmatprep.mubr.f32.mxu0 0.0
    %v1288 = vand.u32 %v189, 4294901760
    %1289 = vmatmul.mubr.f32.gmra.mrb[0].mxu0 %v1288
    %v1290 = vpop.f32.mrb[0].mxu0
    %v1291 = vadd.f32 %v1126, %v1290
    %v1292 = vpop.f32.mrb[0].mxu0
    %1293 = vmatprep.mubr.f32.mxu0 0.0
    %v1294 = vand.u32 %v192, 4294901760
    %1295 = vmatmul.mubr.f32.gmra.mrb[0].mxu0 %v1294
    %v1296 = vpop.f32.mrb[0].mxu0
    %v1297 = vadd.f32 %v1132, %v1296
    %v1298 = vpop.f32.mrb[0].mxu0
    %1299 = vmatprep.mubr.f32.mxu0 0.0
    %v1300 = vand.u32 %v195, 4294901760
    %1301 = vmatmul.mubr.f32.gmra.mrb[0].mxu0 %v1300
    %v1302 = vpop.f32.mrb[0].mxu0
    %v1303 = vadd.f32 %v1138, %v1302
    %v1304 = vpop.f32.mrb[0].mxu0
    %1305 = vmatprep.mubr.f32.mxu0 0.0
    %v1306 = vand.u32 %v198, 4294901760
    %1307 = vmatmul.mubr.f32.gmra.mrb[0].mxu0 %v1306
    %v1308 = vpop.f32.mrb[0].mxu0
    %v1309 = vadd.f32 %v1144, %v1308
    %v1310 = vpop.f32.mrb[0].mxu0
    %1311 = vmatprep.mubr.f32.mxu0 0.0
    %v1312 = vand.u32 %v201, 4294901760
    %1313 = vmatmul.mubr.f32.gmra.mrb[0].mxu0 %v1312
    %v1314 = vpop.f32.mrb[0].mxu0
    %v1315 = vadd.f32 %v1150, %v1314
    %v1316 = vpop.f32.mrb[0].mxu0
    %1317 = vmatprep.mubr.f32.mxu0 0.0
    %v1318 = vand.u32 %v204, 4294901760
    %1319 = vmatmul.mubr.f32.gmra.mrb[0].mxu0 %v1318
    %v1320 = vpop.f32.mrb[0].mxu0
    %v1321 = vadd.f32 %v1156, %v1320
    %v1322 = vpop.f32.mrb[0].mxu0
    %1323 = vmatprep.mubr.f32.mxu0 0.0
    %v1324 = vand.u32 %v207, 4294901760
    %1325 = vmatmul.mubr.f32.gmra.mrb[0].mxu0 %v1324
    %v1326 = vpop.f32.mrb[0].mxu0
    %v1327 = vadd.f32 %v1162, %v1326
    %v1328 = vpop.f32.mrb[0].mxu0
    %1329 = vmatprep.mubr.f32.mxu0 0.0
    %v1330 = vand.u32 %v210, 4294901760
    %1331 = vmatmul.mubr.f32.gmra.mrb[0].mxu0 %v1330
    %v1332 = vpop.f32.mrb[0].mxu0
    %v1333 = vadd.f32 %v1168, %v1332
    %v1334 = vpop.f32.mrb[0].mxu0
    %1335 = vmatprep.mubr.f32.mxu0 0.0
    %v1336 = vand.u32 %v213, 4294901760
    %1337 = vmatmul.mubr.f32.gmra.mrb[0].mxu0 %v1336
    %v1338 = vpop.f32.mrb[0].mxu0
    %v1339 = vadd.f32 %v1174, %v1338
    %v1340 = vpop.f32.mrb[0].mxu0
    %1341 = vmatprep.mubr.f32.mxu0 0.0
    %v1342 = vand.u32 %v216, 4294901760
    %1343 = vmatmul.mubr.f32.gmra.mrb[0].mxu0 %v1342
    %v1344 = vpop.f32.mrb[0].mxu0
    %v1345 = vadd.f32 %v1180, %v1344
    %v1346 = vpop.f32.mrb[0].mxu0
    %1347 = vdwg.mxu0
    %v1348 = vadd.f32 %v149, %v1255
    %v1349 = vadd.f32 %v150, %v1261
    %v1350 = vadd.f32 %v151, %v1267
    %v1351 = vadd.f32 %v152, %v1273
    %v1352 = vadd.f32 %v153, %v1279
    %v1353 = vadd.f32 %v154, %v1285
    %v1354 = vadd.f32 %v155, %v1291
    %v1355 = vadd.f32 %v156, %v1297
    %v1356 = vadd.f32 %v157, %v1303
    %v1357 = vadd.f32 %v158, %v1309
    %v1358 = vadd.f32 %v159, %v1315
    %v1359 = vadd.f32 %v160, %v1321
    %v1360 = vadd.f32 %v161, %v1327
    %v1361 = vadd.f32 %v162, %v1333
    %v1362 = vadd.f32 %v163, %v1339
    %v1363 = vadd.f32 %v164, %v1345
    %1364 = vst [vmem:[#allocation2] sm:$0xff] %v1348
    %1365 = vst [vmem:[#allocation2 + $0x8] sm:$0xff] %v1349
    %1366 = vst [vmem:[#allocation2 + $0x10] sm:$0xff] %v1350
    %1367 = vst [vmem:[#allocation2 + $0x18] sm:$0xff] %v1351
    %1368 = vst [vmem:[#allocation2 + $0x20] sm:$0xff] %v1352
    %1369 = vst [vmem:[#allocation2 + $0x28] sm:$0xff] %v1353
    %1370 = vst [vmem:[#allocation2 + $0x30] sm:$0xff] %v1354
    %1371 = vst [vmem:[#allocation2 + $0x38] sm:$0xff] %v1355
    %1372 = vst [vmem:[#allocation2 + $0x40] sm:$0xff] %v1356
    %1373 = vst [vmem:[#allocation2 + $0x48] sm:$0xff] %v1357
    %1374 = vst [vmem:[#allocation2 + $0x50] sm:$0xff] %v1358
    %1375 = vst [vmem:[#allocation2 + $0x58] sm:$0xff] %v1359
    %1376 = vst [vmem:[#allocation2 + $0x60] sm:$0xff] %v1360
    %1377 = vst [vmem:[#allocation2 + $0x68] sm:$0xff] %v1361
    %1378 = vst [vmem:[#allocation2 + $0x70] sm:$0xff] %v1362
    %1379 = vst [vmem:[#allocation2 + $0x78] sm:$0xff] %v1363
    // Predicated region
    $region14: #{_fused_gather.1} parent=1 // pred_check
      %p1380 = pneg %p12
    $region15: #{_fused_gather.1} parent=1 // pred_check_branch
      %1382 = sbr.rel (%p1380) target = $region17
    $region16: #{_fused_gather.1} parent=1 // pred_region
      %v1383 = vld [vmem:[#allocation2] sm:$0xff]
      %v1384 = vld [vmem:[#allocation2 + $0x8] sm:$0xff]
      %v1385 = vld [vmem:[#allocation2 + $0x10] sm:$0xff]
      %v1386 = vld [vmem:[#allocation2 + $0x18] sm:$0xff]
      %v1387 = vld [vmem:[#allocation2 + $0x20] sm:$0xff]
      %v1388 = vld [vmem:[#allocation2 + $0x28] sm:$0xff]
      %v1389 = vld [vmem:[#allocation2 + $0x30] sm:$0xff]
      %v1390 = vld [vmem:[#allocation2 + $0x38] sm:$0xff]
      %v1391 = vld [vmem:[#allocation2 + $0x40] sm:$0xff]
      %v1392 = vld [vmem:[#allocation2 + $0x48] sm:$0xff]
      %v1393 = vld [vmem:[#allocation2 + $0x50] sm:$0xff]
      %v1394 = vld [vmem:[#allocation2 + $0x58] sm:$0xff]
      %v1395 = vld [vmem:[#allocation2 + $0x60] sm:$0xff]
      %v1396 = vld [vmem:[#allocation2 + $0x68] sm:$0xff]
      %v1397 = vld [vmem:[#allocation2 + $0x70] sm:$0xff]
      %v1398 = vld [vmem:[#allocation2 + $0x78] sm:$0xff]
      %1399 = vst [vmem:[#allocation3] sm:$0xff] %v1383
      %1400 = vst [vmem:[#allocation3 + $0x8] sm:$0xff] %v1384
      %1401 = vst [vmem:[#allocation3 + $0x10] sm:$0xff] %v1385
      %1402 = vst [vmem:[#allocation3 + $0x18] sm:$0xff] %v1386
      %1403 = vst [vmem:[#allocation3 + $0x20] sm:$0xff] %v1387
      %1404 = vst [vmem:[#allocation3 + $0x28] sm:$0xff] %v1388
      %1405 = vst [vmem:[#allocation3 + $0x30] sm:$0xff] %v1389
      %1406 = vst [vmem:[#allocation3 + $0x38] sm:$0xff] %v1390
      %1407 = vst [vmem:[#allocation3 + $0x40] sm:$0xff] %v1391
      %1408 = vst [vmem:[#allocation3 + $0x48] sm:$0xff] %v1392
      %1409 = vst [vmem:[#allocation3 + $0x50] sm:$0xff] %v1393
      %1410 = vst [vmem:[#allocation3 + $0x58] sm:$0xff] %v1394
      %1411 = vst [vmem:[#allocation3 + $0x60] sm:$0xff] %v1395
      %1412 = vst [vmem:[#allocation3 + $0x68] sm:$0xff] %v1396
      %1413 = vst [vmem:[#allocation3 + $0x70] sm:$0xff] %v1397
      %1414 = vst [vmem:[#allocation3 + $0x78] sm:$0xff] %v1398
    $region17: #{_fused_gather.1} parent=1 // pred_fallthru
      _
    // Predicated region
    $region18: #{_fused_gather.1} parent=1 // pred_check
      _
    $region19: #{_fused_gather.1} parent=1 // pred_check_branch
      %1416 = sbr.rel (0) target = $region21
    $region20: #{_fused_gather.1} parent=1 // pred_region
      %s1418 = ssub.s32 2048, 2048
      %1419 = vsyncadd [#allocation4], %s1418
      %s1420 = sshll.u32 [#allocation3], 4
      %s1421 = int_to_ptr.vmem [resolvable:$true] %s1420
      %1426 = dma.vmem_to_hbm [thread:$0]  %s1421, 2048, %s2, [#allocation4], 128, 128, 8
    $region21: #{_fused_gather.1} parent=1 // pred_fallthru
      _
    // Predicated region
    $region22: #{_fused_gather.1} parent=1 // pred_check
      _
    $region23: #{_fused_gather.1} parent=1 // pred_check_branch
      %1428 = sbr.rel (0) target = $region25
    $region24: #{_fused_gather.1} parent=1 // pred_region
      %1429 = dma.done [#allocation4], 2048
    $region25: #{_fused_gather.1} parent=1 // pred_fallthru
      _
    %1430 = vsyncpa [#allocation4], 1

</llo_original>
